<compile_context>
chip_gen: v5e
topology: v5e:2x2
jax: 0.10.0
libtpu: 0.0.40
codegen_flags: <defaults>
</compile_context>

<pallas_src>
import functools

import jax
import jax.numpy as jnp
from jax.experimental import pallas as pl
from jax.experimental.pallas import tpu as pltpu


def _round_up(x, m):
    return ((x + m - 1) // m) * m


def _fm_kernel(lin_ref, emb_ref, m_ref, out_ref, *, input_is_bf16):
    # lin_ref: [TB, F*L], emb_ref: [TB, K*F], m_ref: [K*F, K], out_ref: [1, 1, TB]
    lin = lin_ref[...].astype(jnp.float32)      # [TB, F*L]
    e_raw = emb_ref[...]                        # [TB, K*F] (input dtype)
    m_bf16 = m_ref[...]                         # [K*F, K] 0/1 selection matrix (bf16)

    # s_k = sum_f e[:, k*F + f] via one lane-dense MXU contraction
    # (avoids segmented cross-lane reductions over mostly-padded vregs).
    hi = e_raw.astype(jnp.bfloat16)
    s = jnp.dot(hi, m_bf16, preferred_element_type=jnp.float32)      # [TB, K]
    if input_is_bf16:
        e = e_raw.astype(jnp.float32)
    else:
        # hi/lo split keeps near-f32 precision for f32 inputs (cancellation
        # in order_2); skipped entirely for bf16 inputs where lo == 0.
        e = e_raw.astype(jnp.float32)
        lo = (e - hi.astype(jnp.float32)).astype(jnp.bfloat16)
        s = s + jnp.dot(lo, m_bf16, preferred_element_type=jnp.float32)

    # Total sum of squares: plain lane reduction (XLU slot, no MXU work).
    sq_total = jnp.sum(e * e, axis=-1)              # [TB]
    order_2 = jnp.sum(s * s, axis=-1) - sq_total    # [TB]
    order_1 = jnp.sum(lin, axis=-1)                 # [TB]
    score = order_1 + 0.5 * order_2                 # [TB]

    # Lane-dense output block (batch on lanes -> unmasked stores).
    out_ref[...] = score[None, None, :].astype(out_ref.dtype)


def fm_pallas(linear_part, embs, bias=None, *, tb=1024,
              max_block_bytes=4 * 1024 * 1024,
              vmem_limit_bytes=40 * 1024 * 1024):
    """FM forward. linear_part: [B, F, L], embs: [B, K, F] -> [B] (float32)."""
    if bias is not None:
        # PyTorch's bias=True path holds an empty (zero-element) parameter.
        raise NotImplementedError("bias path not implemented (zero-element param in reference)")

    B, F, L = linear_part.shape
    B2, K, F2 = embs.shape
    assert B == B2 and F == F2, "batch / field dims must agree"

    FL, KF = F * L, K * F

    # Free reshapes: merge trailing contiguous dims (no transpose, no copy).
    lin2 = linear_part.reshape(B, FL)
    emb2 = embs.reshape(B, KF)
    itemsize = emb2.dtype.itemsize

    # Batch tile: multiple of 128 when the batch allows it (lane-dense output,
    # cleanly (8,128)-tiled inputs), capped so the double-buffered emb block
    # stays within max_block_bytes.
    align = 128 if B >= 128 else 8
    rows_cap = max(align, (max_block_bytes // (KF * itemsize)) // align * align)
    tb_eff = max(align, min(_round_up(tb, align), rows_cap, _round_up(B, align)))

    # v7x megacore: prefer >= 2 grid steps so the ("parallel",) axis can shard
    # across both TensorCores instead of leaving one idle.
    if pl.cdiv(B, tb_eff) < 2 and tb_eff >= 2 * align:
        tb_eff = max(align, _round_up(pl.cdiv(B, 2), align))
    num_tiles = pl.cdiv(B, tb_eff)

    # 0/1 field-selection matrix M[k*F + f, k] = 1, built once in the wrapper
    # and kept VMEM-resident across grid steps (index_map -> (0, 0)).
    row = jax.lax.broadcasted_iota(jnp.int32, (KF, K), 0)
    col = jax.lax.broadcasted_iota(jnp.int32, (KF, K), 1)
    m_bf16 = ((row >= col * F) & (row < (col + 1) * F)).astype(jnp.bfloat16)

    input_is_bf16 = emb2.dtype == jnp.bfloat16
    kernel = functools.partial(_fm_kernel, input_is_bf16=input_is_bf16)

    n_dots = 1 if input_is_bf16 else 2
    cost = pl.CostEstimate(
        flops=int(2 * B * KF * K * n_dots + 4 * B * KF + B * FL),
        transcendentals=0,
        bytes_accessed=int(B * (KF + FL) * itemsize + B * 4),
    )

    out = pl.pallas_call(
        kernel,
        out_shape=jax.ShapeDtypeStruct((num_tiles, 1, tb_eff), jnp.float32),
        grid_spec=pltpu.PrefetchScalarGridSpec(
            num_scalar_prefetch=0,
            grid=(num_tiles,),
            in_specs=[
                pl.BlockSpec((tb_eff, FL), lambda i: (i, 0)),
                pl.BlockSpec((tb_eff, KF), lambda i: (i, 0)),
                pl.BlockSpec((KF, K), lambda i: (0, 0)),   # resident constant
            ],
            # Lane-dense (1, 1, TB) output blocks -> unmasked stores.
            out_specs=pl.BlockSpec((1, 1, tb_eff), lambda i: (i, 0, 0)),
        ),
        compiler_params=pltpu.CompilerParams(
            dimension_semantics=("parallel",),   # shards grid across TCs (v7x)
            vmem_limit_bytes=vmem_limit_bytes,
        ),
        cost_estimate=cost,
    )(lin2, emb2, m_bf16)

    # No wrapper padding: the ragged last block reads garbage rows past B,
    # which only affects rows >= B and is sliced off here.  (Safe ONLY because
    # every reduction in the kernel is strictly per-row.)
    return out.reshape(-1)[:B]


def fm_reference(linear_part, embs):
    order_1 = jnp.sum(linear_part, axis=(1, 2))
    order_2 = jnp.sum(jnp.sum(embs, axis=-1) ** 2, axis=-1) - jnp.sum(
        embs ** 2, axis=(1, 2)
    )
    return order_1 + 0.5 * order_2


if __name__ == "__main__":
    # Small, deterministic inputs.  B=300 with tb=128 exercises the ragged
    # tail (3rd tile reads past row 299) and a multi-step (3-tile) grid.
    B, F, K, L = 300, 16, 32, 1
    key = jax.random.PRNGKey(0)
    k1, k2 = jax.random.split(key)
    linear_part = jax.random.normal(k1, (B, F, L), dtype=jnp.float32)
    embs = jax.random.normal(k2, (B, K, F), dtype=jnp.float32)

    out = fm_pallas(linear_part, embs, tb=128)
    jax.block_until_ready(out)

    ref = fm_reference(linear_part, embs)
    assert out.shape == (B,)
    assert jnp.allclose(out, ref, atol=5e-3, rtol=5e-3), (out, ref)
    print("KERNEL_OK")
</pallas_src>

<mosaic_0001>
module attributes {stable_mosaic.version = 11 : i64} {
  func.func @_fm_kernel(%arg0: i32, %arg1: memref<128x16xf32, #tpu.memory_space<vmem>>, %arg2: memref<128x512xf32, #tpu.memory_space<vmem>>, %arg3: memref<512x32xbf16, #tpu.memory_space<vmem>>, %arg4: memref<1x1x128xf32, #tpu.memory_space<vmem>>) attributes {dimension_semantics = [#tpu.dimension_semantics<parallel>], iteration_bounds = array<i64: 3>, scalar_prefetch = 0 : i64, scratch_operands = 0 : i64, tpu.core_type = #tpu.core_type<tc>, window_params = [{transform_indices = @transform_0, window_bounds = array<i64: 128, 16>}, {transform_indices = @transform_1, window_bounds = array<i64: 128, 512>}, {pipeline_mode = #tpu.pipeline_mode<synchronous>, transform_indices = @transform_2, window_bounds = array<i64: 512, 32>}, {transform_indices = @transform_3, window_bounds = array<i64: 1, 1, 128>}]} {
    %c0 = arith.constant 0 : index
    %c0_0 = arith.constant 0 : index
    %0 = vector.load %arg1[%c0, %c0_0] : memref<128x16xf32, #tpu.memory_space<vmem>>, vector<128x16xf32>
    %c0_1 = arith.constant 0 : index
    %c0_2 = arith.constant 0 : index
    %1 = vector.load %arg2[%c0_1, %c0_2] : memref<128x512xf32, #tpu.memory_space<vmem>>, vector<128x512xf32>
    %c0_3 = arith.constant 0 : index
    %c0_4 = arith.constant 0 : index
    %2 = vector.load %arg3[%c0_3, %c0_4] : memref<512x32xbf16, #tpu.memory_space<vmem>>, vector<512x32xbf16>
    %3 = arith.truncf %1 : vector<128x512xf32> to vector<128x512xbf16>
    %cst = arith.constant dense<0.000000e+00> : vector<128x32xf32>
    %4 = tpu.matmul %3, %2, %cst {dimension_numbers = #tpu.dot_dimension_numbers<[1], [0], [0], [1], [0, 0, 1, 1], [], []>} : vector<128x512xbf16>, vector<512x32xbf16>, vector<128x32xf32> -> vector<128x32xf32>
    %5 = arith.extf %3 : vector<128x512xbf16> to vector<128x512xf32>
    %6 = arith.subf %1, %5 : vector<128x512xf32>
    %7 = arith.truncf %6 : vector<128x512xf32> to vector<128x512xbf16>
    %cst_5 = arith.constant dense<0.000000e+00> : vector<128x32xf32>
    %8 = tpu.matmul %7, %2, %cst_5 {dimension_numbers = #tpu.dot_dimension_numbers<[1], [0], [0], [1], [0, 0, 1, 1], [], []>} : vector<128x512xbf16>, vector<512x32xbf16>, vector<128x32xf32> -> vector<128x32xf32>
    %9 = arith.addf %4, %8 : vector<128x32xf32>
    %10 = arith.mulf %1, %1 : vector<128x512xf32>
    %cst_6 = arith.constant dense<0.000000e+00> : vector<128xf32>
    %11 = vector.multi_reduction <add>, %10, %cst_6 [1] : vector<128x512xf32> to vector<128xf32>
    %12 = arith.mulf %9, %9 : vector<128x32xf32>
    %cst_7 = arith.constant dense<0.000000e+00> : vector<128xf32>
    %13 = vector.multi_reduction <add>, %12, %cst_7 [1] : vector<128x32xf32> to vector<128xf32>
    %14 = arith.subf %13, %11 : vector<128xf32>
    %cst_8 = arith.constant dense<0.000000e+00> : vector<128xf32>
    %15 = vector.multi_reduction <add>, %0, %cst_8 [1] : vector<128x16xf32> to vector<128xf32>
    %cst_9 = arith.constant 5.000000e-01 : f32
    %16 = vector.broadcast %cst_9 : f32 to vector<128xf32>
    %17 = arith.mulf %16, %14 : vector<128xf32>
    %18 = arith.addf %15, %17 : vector<128xf32>
    %19 = vector.shape_cast %18 : vector<128xf32> to vector<1x1x128xf32>
    %c0_10 = arith.constant 0 : index
    %c0_11 = arith.constant 0 : index
    %c0_12 = arith.constant 0 : index
    %20 = vector.load %arg4[%c0_10, %c0_11, %c0_12] : memref<1x1x128xf32, #tpu.memory_space<vmem>>, vector<1x1x128xf32>
    tpu.vector_store %arg4[%c0_10, %c0_11, %c0_12], %19 {strides = array<i32>} : memref<1x1x128xf32, #tpu.memory_space<vmem>>, vector<1x1x128xf32>,
    return
  }
  func.func @transform_0(%arg0: i32) -> (i32, i32) {
    %c0_i32 = arith.constant 0 : i32
    %c0_i32_0 = arith.constant 0 : i32
    return %arg0, %c0_i32 : i32, i32
  }
  func.func @transform_1(%arg0: i32) -> (i32, i32) {
    %c0_i32 = arith.constant 0 : i32
    %c0_i32_0 = arith.constant 0 : i32
    return %arg0, %c0_i32 : i32, i32
  }
  func.func @transform_2(%arg0: i32) -> (i32, i32) {
    %c0_i32 = arith.constant 0 : i32
    %c0_i32_0 = arith.constant 0 : i32
    %c0_i32_1 = arith.constant 0 : i32
    return %c0_i32, %c0_i32_0 : i32, i32
  }
  func.func @transform_3(%arg0: i32) -> (i32, i32, i32) {
    %c0_i32 = arith.constant 0 : i32
    %c0_i32_0 = arith.constant 0 : i32
    %c0_i32_1 = arith.constant 0 : i32
    return %arg0, %c0_i32, %c0_i32_0 : i32, i32, i32
  }
}

</mosaic_0001>

<llo_original>
// kernel: tpu_custom_call.1
$region0: #{tpu_custom_call.1}
  #allocation0 [shape = 'u32[]', space=smem, size = 0x4, offset = 0x4, fixed_abs, tag = 'smem constant byte address 0x4 - core index']
  #allocation1 [shape = 'u32[72,128]{1,0:T(1,128)}', space=vmem, size = 0x9000, scoped, tag = 'internal scratch']
  %s0 = inlined_call_operand.vmem [shape: f32[300,16], index: 0, kind: input, shape index: {}]
  %s1 = inlined_call_operand.hbm [shape: f32[300,512], index: 1, kind: input, shape index: {}]
  %s2 = inlined_call_operand.vmem [shape: bf16[512,32], index: 2, kind: input, shape index: {}]
  %s3 = inlined_call_operand.hbm [shape: f32[3,1,128], index: 3, kind: output, shape index: {}]
  %s4 = sld [smem:[#allocation0]]
  $region49: #{tpu_custom_call.1} parent=0
    _
  %s6 = ssub.s32 1, %s4
  %s7 = scalar_select 0, %s6, %s4
  $region1: #{tpu_custom_call.1} parent=0
    #allocation2 [shape = 'u8[524288]{0}', space=vmem, size = 0x80000, scoped, tag = 'input window, operand 1']
    #allocation3 [shape = 's32[2]{0}', space=sflag, size = 0x8, scoped, tag = 'scoped memory for tpu_custom_call.1']
    #allocation4 [shape = 's32[2]{0}', space=sflag, size = 0x8, scoped, tag = 'scoped memory for tpu_custom_call.1']
    #allocation5 [shape = 'u8[1024]{0}', space=vmem, size = 0x400, scoped, tag = 'output window, operand 0']
    %8 = vsyncpa [#allocation3], 0
    %s9 = scalar_lea.sflag [#allocation3], 1
    %10 = vsyncpa %s9, 0
    %11 = vsyncpa [#allocation4], 0
    %s12 = scalar_lea.sflag [#allocation4], 1
    %13 = vsyncpa %s12, 0
    loop: start=0, step=1, limit=5
    $region2: #{tpu_custom_call.1} parent=1 // loop_pre_header
      _
    $region3: #{tpu_custom_call.1} parent=1 // loop_header
      %s15 = sphi 0, %s19
      %p16 = scmp.ge.s32.totalorder %s15, 5
      %s25 = sphi 0, %s27
      %s28 = sphi 0, %s25
      %s29 = sphi 0, %s28
      %s45 = sphi 0, %s29
      %s51 = sphi 0, %s53
      %s54 = sphi 0, %s51
      %s55 = sphi 0, %s54
      %s71 = sphi 0, %s55
      %s75 = sphi 0, %s75
      %s77 = sphi 0, %s75
      %s78 = sphi 0, %s77
      %s92 = sphi 0, %s78
      %s98 = sphi 0, %s100
      %s101 = sphi 0, %s98
      %s102 = sphi 0, %s101
      %s118 = sphi 0, %s102
    $region4: #{tpu_custom_call.1} parent=1 // loop_header_branch
      %18 = sbr.rel (%p16) target = $region8
    $region5: #{tpu_custom_call.1} parent=1 // loop_body
      %s20 = ssub.s32 %s15, 1
      %s21 = ssub.s32 %s15, 2
      %s22 = sadd.s32 %s15, 1
      %s23 = ssub.s32 %s15, %s22
      %p24 = scmp.eq.s32.totalorder %s23, 0
      %s26 = sadd.s32 %s25, 1
      %s27 = scalar_select %p24, %s25, %s26
      %p30 = pneg %p24
      %p31 = scmp.eq.s32.totalorder %s15, 2
      %p32 = por %p30, %p31
      %p33 = scmp.ne.s32.totalorder %s25, %s28
      %p34 = scmp.eq.s32.totalorder %s15, 0
      %p35 = por %p33, %p34
      %p36 = scmp.ne.s32.totalorder %s25, %s28
      %p37 = scmp.eq.s32.totalorder %s20, 2
      %p38 = por %p36, %p37
      %p39 = scmp.ne.s32.totalorder %s28, %s29
      %p40 = scmp.eq.s32.totalorder %s20, 0
      %p41 = por %p39, %p40
      %p42 = scmp.ne.s32.totalorder %s28, %s29
      %p43 = scmp.eq.s32.totalorder %s21, 2
      %p44 = por %p42, %p43
      %p46 = scmp.ne.s32.totalorder %s29, %s45
      %p47 = scmp.eq.s32.totalorder %s21, 0
      %p48 = por %p46, %p47
      %s49 = ssub.s32 %s15, %s22
      %p50 = scmp.eq.s32.totalorder %s49, 0
      %s52 = sadd.s32 %s51, 1
      %s53 = scalar_select %p50, %s51, %s52
      %p56 = pneg %p50
      %p57 = scmp.eq.s32.totalorder %s15, 2
      %p58 = por %p56, %p57
      %p59 = scmp.ne.s32.totalorder %s51, %s54
      %p60 = scmp.eq.s32.totalorder %s15, 0
      %p61 = por %p59, %p60
      %p62 = scmp.ne.s32.totalorder %s51, %s54
      %p63 = scmp.eq.s32.totalorder %s20, 2
      %p64 = por %p62, %p63
      %p65 = scmp.ne.s32.totalorder %s54, %s55
      %p66 = scmp.eq.s32.totalorder %s20, 0
      %p67 = por %p65, %p66
      %p68 = scmp.ne.s32.totalorder %s54, %s55
      %p69 = scmp.eq.s32.totalorder %s21, 2
      %p70 = por %p68, %p69
      %p72 = scmp.ne.s32.totalorder %s55, %s71
      %p73 = scmp.eq.s32.totalorder %s21, 0
      %p74 = por %p72, %p73
      %s76 = sadd.s32 %s75, 1
      %p79 = scmp.eq.s32.totalorder %s15, 2
      %p80 = scmp.ne.s32.totalorder %s75, %s77
      %p81 = scmp.eq.s32.totalorder %s15, 0
      %p82 = por %p80, %p81
      %p83 = scmp.ne.s32.totalorder %s75, %s77
      %p84 = scmp.eq.s32.totalorder %s20, 2
      %p85 = por %p83, %p84
      %p86 = scmp.ne.s32.totalorder %s77, %s78
      %p87 = scmp.eq.s32.totalorder %s20, 0
      %p88 = por %p86, %p87
      %p89 = scmp.ne.s32.totalorder %s77, %s78
      %p90 = scmp.eq.s32.totalorder %s21, 2
      %p91 = por %p89, %p90
      %p93 = scmp.ne.s32.totalorder %s78, %s92
      %p94 = scmp.eq.s32.totalorder %s21, 0
      %p95 = por %p93, %p94
      %s96 = ssub.s32 %s15, %s22
      %p97 = scmp.eq.s32.totalorder %s96, 0
      %s99 = sadd.s32 %s98, 1
      %s100 = scalar_select %p97, %s98, %s99
      %p103 = pneg %p97
      %p104 = scmp.eq.s32.totalorder %s15, 2
      %p105 = por %p103, %p104
      %p106 = scmp.ne.s32.totalorder %s98, %s101
      %p107 = scmp.eq.s32.totalorder %s15, 0
      %p108 = por %p106, %p107
      %p109 = scmp.ne.s32.totalorder %s98, %s101
      %p110 = scmp.eq.s32.totalorder %s20, 2
      %p111 = por %p109, %p110
      %p112 = scmp.ne.s32.totalorder %s101, %s102
      %p113 = scmp.eq.s32.totalorder %s20, 0
      %p114 = por %p112, %p113
      %p115 = scmp.ne.s32.totalorder %s101, %s102
      %p116 = scmp.eq.s32.totalorder %s21, 2
      %p117 = por %p115, %p116
      %p119 = scmp.ne.s32.totalorder %s102, %s118
      %p120 = scmp.eq.s32.totalorder %s21, 0
      %p121 = por %p119, %p120
      %p122 = scmp.le.s32.totalorder 1, %s15
      %p123 = scmp.lt.s32.totalorder %s15, 4
      %p124 = pnand %p122, %p123
      %p125 = pneg %p124
      // Predicated region
      $region9: #{tpu_custom_call.1} parent=5 // pred_check
        _
      $region10: #{tpu_custom_call.1} parent=5 // pred_check_branch
        %127 = sbr.rel (%p124) target = $region12
      $region11: #{tpu_custom_call.1} parent=5 // pred_region
        %s128 = ssub.s32 %s15, 1
        // Predicated region
        $region13: #{tpu_custom_call.1} parent=11 // pred_check
          %p129 = pneg %p88
        $region14: #{tpu_custom_call.1} parent=11 // pred_check_branch
          %131 = sbr.rel (%p129) target = $region16
        $region15: #{tpu_custom_call.1} parent=11 // pred_region
          _
        $region16: #{tpu_custom_call.1} parent=11 // pred_fallthru
          _
      $region12: #{tpu_custom_call.1} parent=5 // pred_fallthru
        _
      %p132 = scmp.lt.s32.totalorder %s15, 3
      // Predicated region
      $region17: #{tpu_custom_call.1} parent=5 // pred_check
        %p133 = pneg %p132
      $region18: #{tpu_custom_call.1} parent=5 // pred_check_branch
        %135 = sbr.rel (%p133) target = $region20
      $region19: #{tpu_custom_call.1} parent=5 // pred_region
        // Predicated region
        $region21: #{tpu_custom_call.1} parent=19 // pred_check
          %p136 = pneg %p35
        $region22: #{tpu_custom_call.1} parent=19 // pred_check_branch
          %138 = sbr.rel (%p136) target = $region24
        $region23: #{tpu_custom_call.1} parent=19 // pred_region
          %s139 = smul.u32 16, %s15
          %s140 = ssub.s32 38, %s139
          %p141 = scmp.lt.s32.totalorder %s140, 16
          %s142 = scalar_select %p141, %s140, 16
          %s143 = smul.u32 8, %s142
          %p144 = scmp.lt.s32.totalorder %s139, 37
          %s145 = scalar_select %p144, %s139, 37
          %s146 = smul.addr %s145, 8
          %s147 = scalar_lea.vmem %s0, %s146
          %s148 = smul.u32 16, %s15
          %s149 = ssub.s32 38, %s148
          %p150 = scmp.lt.s32.totalorder %s149, 16
          %s151 = scalar_select %p150, %s149, 16
          %s152 = smul.u32 8, %s151
        $region24: #{tpu_custom_call.1} parent=19 // pred_fallthru
          _
        // Predicated region
        $region25: #{tpu_custom_call.1} parent=19 // pred_check
          %p153 = pneg %p61
        $region26: #{tpu_custom_call.1} parent=19 // pred_check_branch
          %155 = sbr.rel (%p153) target = $region28
        $region27: #{tpu_custom_call.1} parent=19 // pred_region
          %s156 = sand.u32 %s51, 1
          %s157 = scalar_lea.sflag [#allocation3], %s156
          %s158 = sand.u32 %s51, 1
          %s159 = smul.addr %s158, 512
          %s160 = scalar_lea.vmem [#allocation2], %s159
          %s161 = smul.u32 16, %s15
          %s162 = ssub.s32 38, %s161
          %p163 = scmp.lt.s32.totalorder %s162, 16
          %s164 = scalar_select %p163, %s162, 16
          %s165 = smul.u32 8, %s164
          %s166 = smul.u32 %s165, 4
          %s167 = ssub.s32 512, %s166
          %s168 = sshll.u32 %s167, 4
          %169 = vsyncadd %s157, %s168
          %p170 = scmp.ne.s32.totalorder 0, %s166
          %s171 = smul.addr %s161, 4
          %s172 = smul.addr %s171, 8
          %s173 = scalar_lea.hbm %s1, %s172
          %s174 = smul.u32 32, %s164
          %s175 = sshll.u32 %s173, 4
          %s176 = int_to_ptr.hbm [resolvable:$true] %s175
          %s177 = sshll.u32 %s160, 4
          %s178 = int_to_ptr.vmem [resolvable:$true] %s177
          %s179 = sshll.u32 %s174, 4
          %183 = dma.hbm_to_vmem [thread:$0]  (%p170), %s176, %s179, %s178, %s157, 512, 512, 32
        $region28: #{tpu_custom_call.1} parent=19 // pred_fallthru
          _
      $region20: #{tpu_custom_call.1} parent=5 // pred_fallthru
        _
      %p184 = scmp.le.s32.totalorder 1, %s15
      %p185 = scmp.lt.s32.totalorder %s15, 4
      %p186 = pnand %p184, %p185
      %p187 = pneg %p186
      // Predicated region
      $region29: #{tpu_custom_call.1} parent=5 // pred_check
        _
      $region30: #{tpu_custom_call.1} parent=5 // pred_check_branch
        %189 = sbr.rel (%p186) target = $region32
      $region31: #{tpu_custom_call.1} parent=5 // pred_region
        %s190 = ssub.s32 %s15, 1
        %s191 = sand.u32 %s54, 1
        %s192 = scalar_lea.sflag [#allocation3], %s191
        %s193 = sand.u32 %s54, 1
        %s194 = smul.addr %s193, 512
        %s195 = scalar_lea.vmem [#allocation2], %s194
        // Predicated region
        $region33: #{tpu_custom_call.1} parent=31 // pred_check
          %p196 = pneg %p67
        $region34: #{tpu_custom_call.1} parent=31 // pred_check_branch
          %198 = sbr.rel (%p196) target = $region36
        $region35: #{tpu_custom_call.1} parent=31 // pred_region
          %200 = dma.done %s192, 8192
        $region36: #{tpu_custom_call.1} parent=31 // pred_fallthru
          _
        %s201 = smul.u32 16, %s20
        %s202 = ssub.s32 38, %s201
        %p203 = scmp.lt.s32.totalorder %s202, 16
        %s204 = scalar_select %p203, %s202, 16
        %s205 = smul.u32 8, %s204
        %p206 = scmp.lt.s32.totalorder %s201, 37
        %s207 = scalar_select %p206, %s201, 37
        %s208 = smul.addr %s207, 8
        %s209 = scalar_lea.vmem %s0, %s208
        %p210 = pneg %p41
        %p211 = pneg %p38
        %s212 = sand.u32 %s54, 1
        %s213 = scalar_lea.sflag [#allocation3], %s212
        %s214 = sand.u32 %s54, 1
        %s215 = smul.addr %s214, 512
        %s216 = scalar_lea.vmem [#allocation2], %s215
        %p217 = pneg %p67
        %p218 = pneg %p64
        %p219 = pneg %p88
        %p220 = pneg %p85
        %p221 = pneg %p114
        %p222 = pneg %p111
        %s223 = sand.u32 %s101, 1
        %s224 = scalar_lea.sflag [#allocation4], %s223
        %s225 = sand.u32 %s101, 1
        %s226 = scalar_lea.vmem [#allocation5], %s225
        %s227 = smul.u32 16, %s20
        %s228 = ssub.s32 38, %s227
        %p229 = scmp.lt.s32.totalorder %s228, 16
        %s230 = scalar_select %p229, %s228, 16
        %s231 = smul.u32 8, %s230
        %p232 = scmp.lt.s32.totalorder %s227, 37
        %s233 = scalar_select %p232, %s227, 37
        %s234 = smul.addr %s233, 8
        %s235 = scalar_lea.vmem %s0, %s234
        %s236 = smul.u32 16, %s20
        %s237 = ssub.s32 38, %s236
        %p238 = scmp.lt.s32.totalorder %s237, 16
        %s239 = scalar_select %p238, %s237, 16
        %s240 = smul.u32 8, %s239
        %s241 = smul.u32 16, %s20
        %s242 = ssub.s32 38, %s241
        %p243 = scmp.lt.s32.totalorder %s242, 16
        %s244 = scalar_select %p243, %s242, 16
        %s245 = smul.u32 8, %s244
        %s246 = smul.u32 %s245, 4
        %v247 = vld [vmem:[%s235] sm:$0xff]
        %v248 = vld [vmem:[%s235 + $0x8] sm:$0xff]
        %v249 = vld [vmem:[%s235 + $0x10] sm:$0xff]
        %v250 = vld [vmem:[%s235 + $0x18] sm:$0xff]
        %v251 = vld [vmem:[%s235 + $0x20] sm:$0xff]
        %v252 = vld [vmem:[%s235 + $0x28] sm:$0xff]
        %v253 = vld [vmem:[%s235 + $0x30] sm:$0xff]
        %v254 = vld [vmem:[%s235 + $0x38] sm:$0xff]
        %v255 = vld [vmem:[%s235 + $0x40] sm:$0xff]
        %v256 = vld [vmem:[%s235 + $0x48] sm:$0xff]
        %v257 = vld [vmem:[%s235 + $0x50] sm:$0xff]
        %v258 = vld [vmem:[%s235 + $0x58] sm:$0xff]
        %v259 = vld [vmem:[%s235 + $0x60] sm:$0xff]
        %v260 = vld [vmem:[%s235 + $0x68] sm:$0xff]
        %v261 = vld [vmem:[%s235 + $0x70] sm:$0xff]
        %v262 = vld [vmem:[%s235 + $0x78] sm:$0xff]
        %v263 = vld [vmem:[%s195] sm:$0xff]
        %v264 = vld [vmem:[%s195 + $0x8] sm:$0xff]
        %v265 = vld [vmem:[%s195 + $0x10] sm:$0xff]
        %v266 = vld [vmem:[%s195 + $0x18] sm:$0xff]
        %v267 = vld [vmem:[%s195 + $0x20] sm:$0xff]
        %v268 = vld [vmem:[%s195 + $0x28] sm:$0xff]
        %v269 = vld [vmem:[%s195 + $0x30] sm:$0xff]
        %v270 = vld [vmem:[%s195 + $0x38] sm:$0xff]
        %v271 = vld [vmem:[%s195 + $0x40] sm:$0xff]
        %v272 = vld [vmem:[%s195 + $0x48] sm:$0xff]
        %v273 = vld [vmem:[%s195 + $0x50] sm:$0xff]
        %v274 = vld [vmem:[%s195 + $0x58] sm:$0xff]
        %v275 = vld [vmem:[%s195 + $0x60] sm:$0xff]
        %v276 = vld [vmem:[%s195 + $0x68] sm:$0xff]
        %v277 = vld [vmem:[%s195 + $0x70] sm:$0xff]
        %v278 = vld [vmem:[%s195 + $0x78] sm:$0xff]
        %v279 = vld [vmem:[%s195 + $0x80] sm:$0xff]
        %v280 = vld [vmem:[%s195 + $0x88] sm:$0xff]
        %v281 = vld [vmem:[%s195 + $0x90] sm:$0xff]
        %v282 = vld [vmem:[%s195 + $0x98] sm:$0xff]
        %v283 = vld [vmem:[%s195 + $0xa0] sm:$0xff]
        %v284 = vld [vmem:[%s195 + $0xa8] sm:$0xff]
        %v285 = vld [vmem:[%s195 + $0xb0] sm:$0xff]
        %v286 = vld [vmem:[%s195 + $0xb8] sm:$0xff]
        %v287 = vld [vmem:[%s195 + $0xc0] sm:$0xff]
        %v288 = vld [vmem:[%s195 + $0xc8] sm:$0xff]
        %v289 = vld [vmem:[%s195 + $0xd0] sm:$0xff]
        %v290 = vld [vmem:[%s195 + $0xd8] sm:$0xff]
        %v291 = vld [vmem:[%s195 + $0xe0] sm:$0xff]
        %v292 = vld [vmem:[%s195 + $0xe8] sm:$0xff]
        %v293 = vld [vmem:[%s195 + $0xf0] sm:$0xff]
        %v294 = vld [vmem:[%s195 + $0xf8] sm:$0xff]
        %v295 = vld [vmem:[%s195 + $0x100] sm:$0xff]
        %v296 = vld [vmem:[%s195 + $0x108] sm:$0xff]
        %v297 = vld [vmem:[%s195 + $0x110] sm:$0xff]
        %v298 = vld [vmem:[%s195 + $0x118] sm:$0xff]
        %v299 = vld [vmem:[%s195 + $0x120] sm:$0xff]
        %v300 = vld [vmem:[%s195 + $0x128] sm:$0xff]
        %v301 = vld [vmem:[%s195 + $0x130] sm:$0xff]
        %v302 = vld [vmem:[%s195 + $0x138] sm:$0xff]
        %v303 = vld [vmem:[%s195 + $0x140] sm:$0xff]
        %v304 = vld [vmem:[%s195 + $0x148] sm:$0xff]
        %v305 = vld [vmem:[%s195 + $0x150] sm:$0xff]
        %v306 = vld [vmem:[%s195 + $0x158] sm:$0xff]
        %v307 = vld [vmem:[%s195 + $0x160] sm:$0xff]
        %v308 = vld [vmem:[%s195 + $0x168] sm:$0xff]
        %v309 = vld [vmem:[%s195 + $0x170] sm:$0xff]
        %v310 = vld [vmem:[%s195 + $0x178] sm:$0xff]
        %v311 = vld [vmem:[%s195 + $0x180] sm:$0xff]
        %v312 = vld [vmem:[%s195 + $0x188] sm:$0xff]
        %v313 = vld [vmem:[%s195 + $0x190] sm:$0xff]
        %v314 = vld [vmem:[%s195 + $0x198] sm:$0xff]
        %v315 = vld [vmem:[%s195 + $0x1a0] sm:$0xff]
        %v316 = vld [vmem:[%s195 + $0x1a8] sm:$0xff]
        %v317 = vld [vmem:[%s195 + $0x1b0] sm:$0xff]
        %v318 = vld [vmem:[%s195 + $0x1b8] sm:$0xff]
        %v319 = vld [vmem:[%s195 + $0x1c0] sm:$0xff]
        %v320 = vld [vmem:[%s195 + $0x1c8] sm:$0xff]
        %v321 = vld [vmem:[%s195 + $0x1d0] sm:$0xff]
        %v322 = vld [vmem:[%s195 + $0x1d8] sm:$0xff]
        %v323 = vld [vmem:[%s195 + $0x1e0] sm:$0xff]
        %v324 = vld [vmem:[%s195 + $0x1e8] sm:$0xff]
        %v325 = vld [vmem:[%s195 + $0x1f0] sm:$0xff]
        %v326 = vld [vmem:[%s195 + $0x1f8] sm:$0xff]
        %v327 = vld [vmem:[%s2] sm:$0xf]
        %v328 = vld [vmem:[%s2 + $0x4] sm:$0xf]
        %v329 = vld [vmem:[%s2 + $0x8] sm:$0xf]
        %v330 = vld [vmem:[%s2 + $0xc] sm:$0xf]
        %v331 = vld [vmem:[%s2 + $0x10] sm:$0xf]
        %v332 = vld [vmem:[%s2 + $0x14] sm:$0xf]
        %v333 = vld [vmem:[%s2 + $0x18] sm:$0xf]
        %v334 = vld [vmem:[%s2 + $0x1c] sm:$0xf]
        %v335 = vld [vmem:[%s2 + $0x20] sm:$0xf]
        %v336 = vld [vmem:[%s2 + $0x24] sm:$0xf]
        %v337 = vld [vmem:[%s2 + $0x28] sm:$0xf]
        %v338 = vld [vmem:[%s2 + $0x2c] sm:$0xf]
        %v339 = vld [vmem:[%s2 + $0x30] sm:$0xf]
        %v340 = vld [vmem:[%s2 + $0x34] sm:$0xf]
        %v341 = vld [vmem:[%s2 + $0x38] sm:$0xf]
        %v342 = vld [vmem:[%s2 + $0x3c] sm:$0xf]
        %v343 = vld [vmem:[%s2 + $0x40] sm:$0xf]
        %v344 = vld [vmem:[%s2 + $0x44] sm:$0xf]
        %v345 = vld [vmem:[%s2 + $0x48] sm:$0xf]
        %v346 = vld [vmem:[%s2 + $0x4c] sm:$0xf]
        %v347 = vld [vmem:[%s2 + $0x50] sm:$0xf]
        %v348 = vld [vmem:[%s2 + $0x54] sm:$0xf]
        %v349 = vld [vmem:[%s2 + $0x58] sm:$0xf]
        %v350 = vld [vmem:[%s2 + $0x5c] sm:$0xf]
        %v351 = vld [vmem:[%s2 + $0x60] sm:$0xf]
        %v352 = vld [vmem:[%s2 + $0x64] sm:$0xf]
        %v353 = vld [vmem:[%s2 + $0x68] sm:$0xf]
        %v354 = vld [vmem:[%s2 + $0x6c] sm:$0xf]
        %v355 = vld [vmem:[%s2 + $0x70] sm:$0xf]
        %v356 = vld [vmem:[%s2 + $0x74] sm:$0xf]
        %v357 = vld [vmem:[%s2 + $0x78] sm:$0xf]
        %v358 = vld [vmem:[%s2 + $0x7c] sm:$0xf]
        %v359 = vld [vmem:[%s2 + $0x80] sm:$0xf]
        %v360 = vld [vmem:[%s2 + $0x84] sm:$0xf]
        %v361 = vld [vmem:[%s2 + $0x88] sm:$0xf]
        %v362 = vld [vmem:[%s2 + $0x8c] sm:$0xf]
        %v363 = vld [vmem:[%s2 + $0x90] sm:$0xf]
        %v364 = vld [vmem:[%s2 + $0x94] sm:$0xf]
        %v365 = vld [vmem:[%s2 + $0x98] sm:$0xf]
        %v366 = vld [vmem:[%s2 + $0x9c] sm:$0xf]
        %v367 = vld [vmem:[%s2 + $0xa0] sm:$0xf]
        %v368 = vld [vmem:[%s2 + $0xa4] sm:$0xf]
        %v369 = vld [vmem:[%s2 + $0xa8] sm:$0xf]
        %v370 = vld [vmem:[%s2 + $0xac] sm:$0xf]
        %v371 = vld [vmem:[%s2 + $0xb0] sm:$0xf]
        %v372 = vld [vmem:[%s2 + $0xb4] sm:$0xf]
        %v373 = vld [vmem:[%s2 + $0xb8] sm:$0xf]
        %v374 = vld [vmem:[%s2 + $0xbc] sm:$0xf]
        %v375 = vld [vmem:[%s2 + $0xc0] sm:$0xf]
        %v376 = vld [vmem:[%s2 + $0xc4] sm:$0xf]
        %v377 = vld [vmem:[%s2 + $0xc8] sm:$0xf]
        %v378 = vld [vmem:[%s2 + $0xcc] sm:$0xf]
        %v379 = vld [vmem:[%s2 + $0xd0] sm:$0xf]
        %v380 = vld [vmem:[%s2 + $0xd4] sm:$0xf]
        %v381 = vld [vmem:[%s2 + $0xd8] sm:$0xf]
        %v382 = vld [vmem:[%s2 + $0xdc] sm:$0xf]
        %v383 = vld [vmem:[%s2 + $0xe0] sm:$0xf]
        %v384 = vld [vmem:[%s2 + $0xe4] sm:$0xf]
        %v385 = vld [vmem:[%s2 + $0xe8] sm:$0xf]
        %v386 = vld [vmem:[%s2 + $0xec] sm:$0xf]
        %v387 = vld [vmem:[%s2 + $0xf0] sm:$0xf]
        %v388 = vld [vmem:[%s2 + $0xf4] sm:$0xf]
        %v389 = vld [vmem:[%s2 + $0xf8] sm:$0xf]
        %v390 = vld [vmem:[%s2 + $0xfc] sm:$0xf]
        %v391 = vpack.c.bf16 %v264, %v263
        %v392 = vpack.c.bf16 %v266, %v265
        %v393 = vpack.c.bf16 %v268, %v267
        %v394 = vpack.c.bf16 %v270, %v269
        %v395 = vpack.c.bf16 %v272, %v271
        %v396 = vpack.c.bf16 %v274, %v273
        %v397 = vpack.c.bf16 %v276, %v275
        %v398 = vpack.c.bf16 %v278, %v277
        %v399 = vpack.c.bf16 %v280, %v279
        %v400 = vpack.c.bf16 %v282, %v281
        %v401 = vpack.c.bf16 %v284, %v283
        %v402 = vpack.c.bf16 %v286, %v285
        %v403 = vpack.c.bf16 %v288, %v287
        %v404 = vpack.c.bf16 %v290, %v289
        %v405 = vpack.c.bf16 %v292, %v291
        %v406 = vpack.c.bf16 %v294, %v293
        %v407 = vpack.c.bf16 %v296, %v295
        %v408 = vpack.c.bf16 %v298, %v297
        %v409 = vpack.c.bf16 %v300, %v299
        %v410 = vpack.c.bf16 %v302, %v301
        %v411 = vpack.c.bf16 %v304, %v303
        %v412 = vpack.c.bf16 %v306, %v305
        %v413 = vpack.c.bf16 %v308, %v307
        %v414 = vpack.c.bf16 %v310, %v309
        %v415 = vpack.c.bf16 %v312, %v311
        %v416 = vpack.c.bf16 %v314, %v313
        %v417 = vpack.c.bf16 %v316, %v315
        %v418 = vpack.c.bf16 %v318, %v317
        %v419 = vpack.c.bf16 %v320, %v319
        %v420 = vpack.c.bf16 %v322, %v321
        %v421 = vpack.c.bf16 %v324, %v323
        %v422 = vpack.c.bf16 %v326, %v325
        %v423 = vunpack.c.l.bf16 %v391
        %v424 = vunpack.c.h.bf16 %v391
        %v425 = vunpack.c.l.bf16 %v392
        %v426 = vunpack.c.h.bf16 %v392
        %v427 = vunpack.c.l.bf16 %v393
        %v428 = vunpack.c.h.bf16 %v393
        %v429 = vunpack.c.l.bf16 %v394
        %v430 = vunpack.c.h.bf16 %v394
        %v431 = vunpack.c.l.bf16 %v395
        %v432 = vunpack.c.h.bf16 %v395
        %v433 = vunpack.c.l.bf16 %v396
        %v434 = vunpack.c.h.bf16 %v396
        %v435 = vunpack.c.l.bf16 %v397
        %v436 = vunpack.c.h.bf16 %v397
        %v437 = vunpack.c.l.bf16 %v398
        %v438 = vunpack.c.h.bf16 %v398
        %v439 = vunpack.c.l.bf16 %v399
        %v440 = vunpack.c.h.bf16 %v399
        %v441 = vunpack.c.l.bf16 %v400
        %v442 = vunpack.c.h.bf16 %v400
        %v443 = vunpack.c.l.bf16 %v401
        %v444 = vunpack.c.h.bf16 %v401
        %v445 = vunpack.c.l.bf16 %v402
        %v446 = vunpack.c.h.bf16 %v402
        %v447 = vunpack.c.l.bf16 %v403
        %v448 = vunpack.c.h.bf16 %v403
        %v449 = vunpack.c.l.bf16 %v404
        %v450 = vunpack.c.h.bf16 %v404
        %v451 = vunpack.c.l.bf16 %v405
        %v452 = vunpack.c.h.bf16 %v405
        %v453 = vunpack.c.l.bf16 %v406
        %v454 = vunpack.c.h.bf16 %v406
        %v455 = vunpack.c.l.bf16 %v407
        %v456 = vunpack.c.h.bf16 %v407
        %v457 = vunpack.c.l.bf16 %v408
        %v458 = vunpack.c.h.bf16 %v408
        %v459 = vunpack.c.l.bf16 %v409
        %v460 = vunpack.c.h.bf16 %v409
        %v461 = vunpack.c.l.bf16 %v410
        %v462 = vunpack.c.h.bf16 %v410
        %v463 = vunpack.c.l.bf16 %v411
        %v464 = vunpack.c.h.bf16 %v411
        %v465 = vunpack.c.l.bf16 %v412
        %v466 = vunpack.c.h.bf16 %v412
        %v467 = vunpack.c.l.bf16 %v413
        %v468 = vunpack.c.h.bf16 %v413
        %v469 = vunpack.c.l.bf16 %v414
        %v470 = vunpack.c.h.bf16 %v414
        %v471 = vunpack.c.l.bf16 %v415
        %v472 = vunpack.c.h.bf16 %v415
        %v473 = vunpack.c.l.bf16 %v416
        %v474 = vunpack.c.h.bf16 %v416
        %v475 = vunpack.c.l.bf16 %v417
        %v476 = vunpack.c.h.bf16 %v417
        %v477 = vunpack.c.l.bf16 %v418
        %v478 = vunpack.c.h.bf16 %v418
        %v479 = vunpack.c.l.bf16 %v419
        %v480 = vunpack.c.h.bf16 %v419
        %v481 = vunpack.c.l.bf16 %v420
        %v482 = vunpack.c.h.bf16 %v420
        %v483 = vunpack.c.l.bf16 %v421
        %v484 = vunpack.c.h.bf16 %v421
        %v485 = vunpack.c.l.bf16 %v422
        %v486 = vunpack.c.h.bf16 %v422
        %v487 = vsub.f32 %v263, %v423
        %v488 = vsub.f32 %v264, %v424
        %v489 = vsub.f32 %v265, %v425
        %v490 = vsub.f32 %v266, %v426
        %v491 = vsub.f32 %v267, %v427
        %v492 = vsub.f32 %v268, %v428
        %v493 = vsub.f32 %v269, %v429
        %v494 = vsub.f32 %v270, %v430
        %v495 = vsub.f32 %v271, %v431
        %v496 = vsub.f32 %v272, %v432
        %v497 = vsub.f32 %v273, %v433
        %v498 = vsub.f32 %v274, %v434
        %v499 = vsub.f32 %v275, %v435
        %v500 = vsub.f32 %v276, %v436
        %v501 = vsub.f32 %v277, %v437
        %v502 = vsub.f32 %v278, %v438
        %v503 = vsub.f32 %v279, %v439
        %v504 = vsub.f32 %v280, %v440
        %v505 = vsub.f32 %v281, %v441
        %v506 = vsub.f32 %v282, %v442
        %v507 = vsub.f32 %v283, %v443
        %v508 = vsub.f32 %v284, %v444
        %v509 = vsub.f32 %v285, %v445
        %v510 = vsub.f32 %v286, %v446
        %v511 = vsub.f32 %v287, %v447
        %v512 = vsub.f32 %v288, %v448
        %v513 = vsub.f32 %v289, %v449
        %v514 = vsub.f32 %v290, %v450
        %v515 = vsub.f32 %v291, %v451
        %v516 = vsub.f32 %v292, %v452
        %v517 = vsub.f32 %v293, %v453
        %v518 = vsub.f32 %v294, %v454
        %v519 = vsub.f32 %v295, %v455
        %v520 = vsub.f32 %v296, %v456
        %v521 = vsub.f32 %v297, %v457
        %v522 = vsub.f32 %v298, %v458
        %v523 = vsub.f32 %v299, %v459
        %v524 = vsub.f32 %v300, %v460
        %v525 = vsub.f32 %v301, %v461
        %v526 = vsub.f32 %v302, %v462
        %v527 = vsub.f32 %v303, %v463
        %v528 = vsub.f32 %v304, %v464
        %v529 = vsub.f32 %v305, %v465
        %v530 = vsub.f32 %v306, %v466
        %v531 = vsub.f32 %v307, %v467
        %v532 = vsub.f32 %v308, %v468
        %v533 = vsub.f32 %v309, %v469
        %v534 = vsub.f32 %v310, %v470
        %v535 = vsub.f32 %v311, %v471
        %v536 = vsub.f32 %v312, %v472
        %v537 = vsub.f32 %v313, %v473
        %v538 = vsub.f32 %v314, %v474
        %v539 = vsub.f32 %v315, %v475
        %v540 = vsub.f32 %v316, %v476
        %v541 = vsub.f32 %v317, %v477
        %v542 = vsub.f32 %v318, %v478
        %v543 = vsub.f32 %v319, %v479
        %v544 = vsub.f32 %v320, %v480
        %v545 = vsub.f32 %v321, %v481
        %v546 = vsub.f32 %v322, %v482
        %v547 = vsub.f32 %v323, %v483
        %v548 = vsub.f32 %v324, %v484
        %v549 = vsub.f32 %v325, %v485
        %v550 = vsub.f32 %v326, %v486
        %v551 = vpack.c.bf16 %v491, %v487
        %v552 = vpack.c.bf16 %v492, %v488
        %v553 = vpack.c.bf16 %v493, %v489
        %v554 = vpack.c.bf16 %v494, %v490
        %v555 = vpack.c.bf16 %v499, %v495
        %v556 = vpack.c.bf16 %v500, %v496
        %v557 = vpack.c.bf16 %v501, %v497
        %v558 = vpack.c.bf16 %v502, %v498
        %v559 = vpack.c.bf16 %v507, %v503
        %v560 = vpack.c.bf16 %v508, %v504
        %v561 = vpack.c.bf16 %v509, %v505
        %v562 = vpack.c.bf16 %v510, %v506
        %v563 = vpack.c.bf16 %v515, %v511
        %v564 = vpack.c.bf16 %v516, %v512
        %v565 = vpack.c.bf16 %v517, %v513
        %v566 = vpack.c.bf16 %v518, %v514
        %v567 = vpack.c.bf16 %v523, %v519
        %v568 = vpack.c.bf16 %v524, %v520
        %v569 = vpack.c.bf16 %v525, %v521
        %v570 = vpack.c.bf16 %v526, %v522
        %v571 = vpack.c.bf16 %v531, %v527
        %v572 = vpack.c.bf16 %v532, %v528
        %v573 = vpack.c.bf16 %v533, %v529
        %v574 = vpack.c.bf16 %v534, %v530
        %v575 = vpack.c.bf16 %v539, %v535
        %v576 = vpack.c.bf16 %v540, %v536
        %v577 = vpack.c.bf16 %v541, %v537
        %v578 = vpack.c.bf16 %v542, %v538
        %v579 = vpack.c.bf16 %v547, %v543
        %v580 = vpack.c.bf16 %v548, %v544
        %v581 = vpack.c.bf16 %v549, %v545
        %v582 = vpack.c.bf16 %v550, %v546
        %v647 = vunpack.c.l.b16 %v327
        %v648 = vunpack.c.l.b16 %v328
        %v649 = vunpack.c.l.b16 %v329
        %v650 = vunpack.c.l.b16 %v330
        %v651 = vunpack.c.l.b16 %v331
        %v652 = vunpack.c.l.b16 %v332
        %v653 = vunpack.c.l.b16 %v333
        %v654 = vunpack.c.l.b16 %v334
        %v655 = vunpack.c.l.b16 %v335
        %v656 = vunpack.c.l.b16 %v336
        %v657 = vunpack.c.l.b16 %v337
        %v658 = vunpack.c.l.b16 %v338
        %v659 = vunpack.c.l.b16 %v339
        %v660 = vunpack.c.l.b16 %v340
        %v661 = vunpack.c.l.b16 %v341
        %v662 = vunpack.c.l.b16 %v342
        %v663 = vunpack.c.l.b16 %v343
        %v664 = vunpack.c.l.b16 %v344
        %v665 = vunpack.c.l.b16 %v345
        %v666 = vunpack.c.l.b16 %v346
        %v667 = vunpack.c.l.b16 %v347
        %v668 = vunpack.c.l.b16 %v348
        %v669 = vunpack.c.l.b16 %v349
        %v670 = vunpack.c.l.b16 %v350
        %v671 = vunpack.c.l.b16 %v351
        %v672 = vunpack.c.l.b16 %v352
        %v673 = vunpack.c.l.b16 %v353
        %v674 = vunpack.c.l.b16 %v354
        %v675 = vunpack.c.l.b16 %v355
        %v676 = vunpack.c.l.b16 %v356
        %v677 = vunpack.c.l.b16 %v357
        %v678 = vunpack.c.l.b16 %v358
        %v679 = vunpack.c.l.b16 %v359
        %v680 = vunpack.c.l.b16 %v360
        %v681 = vunpack.c.l.b16 %v361
        %v682 = vunpack.c.l.b16 %v362
        %v683 = vunpack.c.l.b16 %v363
        %v684 = vunpack.c.l.b16 %v364
        %v685 = vunpack.c.l.b16 %v365
        %v686 = vunpack.c.l.b16 %v366
        %v687 = vunpack.c.l.b16 %v367
        %v688 = vunpack.c.l.b16 %v368
        %v689 = vunpack.c.l.b16 %v369
        %v690 = vunpack.c.l.b16 %v370
        %v691 = vunpack.c.l.b16 %v371
        %v692 = vunpack.c.l.b16 %v372
        %v693 = vunpack.c.l.b16 %v373
        %v694 = vunpack.c.l.b16 %v374
        %v695 = vunpack.c.l.b16 %v375
        %v696 = vunpack.c.l.b16 %v376
        %v697 = vunpack.c.l.b16 %v377
        %v698 = vunpack.c.l.b16 %v378
        %v699 = vunpack.c.l.b16 %v379
        %v700 = vunpack.c.l.b16 %v380
        %v701 = vunpack.c.l.b16 %v381
        %v702 = vunpack.c.l.b16 %v382
        %v703 = vunpack.c.l.b16 %v383
        %v704 = vunpack.c.l.b16 %v384
        %v705 = vunpack.c.l.b16 %v385
        %v706 = vunpack.c.l.b16 %v386
        %v707 = vunpack.c.l.b16 %v387
        %v708 = vunpack.c.l.b16 %v388
        %v709 = vunpack.c.l.b16 %v389
        %v710 = vunpack.c.l.b16 %v390
        %v711 = vpack.c.b16 %v648, %v647
        %v712 = vpack.c.b16 %v650, %v649
        %v713 = vpack.c.b16 %v652, %v651
        %v714 = vpack.c.b16 %v654, %v653
        %v715 = vpack.c.b16 %v656, %v655
        %v716 = vpack.c.b16 %v658, %v657
        %v717 = vpack.c.b16 %v660, %v659
        %v718 = vpack.c.b16 %v662, %v661
        %v719 = vpack.c.b16 %v664, %v663
        %v720 = vpack.c.b16 %v666, %v665
        %v721 = vpack.c.b16 %v668, %v667
        %v722 = vpack.c.b16 %v670, %v669
        %v723 = vpack.c.b16 %v672, %v671
        %v724 = vpack.c.b16 %v674, %v673
        %v725 = vpack.c.b16 %v676, %v675
        %v726 = vpack.c.b16 %v678, %v677
        %v727 = vpack.c.b16 %v680, %v679
        %v728 = vpack.c.b16 %v682, %v681
        %v729 = vpack.c.b16 %v684, %v683
        %v730 = vpack.c.b16 %v686, %v685
        %v731 = vpack.c.b16 %v688, %v687
        %v732 = vpack.c.b16 %v690, %v689
        %v733 = vpack.c.b16 %v692, %v691
        %v734 = vpack.c.b16 %v694, %v693
        %v735 = vpack.c.b16 %v696, %v695
        %v736 = vpack.c.b16 %v698, %v697
        %v737 = vpack.c.b16 %v700, %v699
        %v738 = vpack.c.b16 %v702, %v701
        %v739 = vpack.c.b16 %v704, %v703
        %v740 = vpack.c.b16 %v706, %v705
        %v741 = vpack.c.b16 %v708, %v707
        %v742 = vpack.c.b16 %v710, %v709
        %775 = vmatpush.bf16.msra.mxu0 %v718
        %776 = vmatpush.bf16.msra.mxu0 %v717
        %777 = vmatpush.bf16.msra.mxu0 %v716
        %778 = vmatpush.bf16.msra.mxu0 %v715
        %779 = vmatpush.bf16.msra.mxu0 %v714
        %780 = vmatpush.bf16.msra.mxu0 %v713
        %781 = vmatpush.bf16.msra.mxu0 %v712
        %782 = vmatpush.bf16.msra.mxu0 %v711
        %783 = vmatmul.bf16.gmra.mxu0 %v551
        %v784 = vpop.f32.mrf.mxu0
        %v785 = vadd.f32 0.0, %v784
        %v786 = vpop.f32.mrf.mxu0
        %v787 = vadd.f32 0.0, %v786
        %788 = vmatmul.bf16.gmra.mxu0 %v555
        %v789 = vpop.f32.mrf.mxu0
        %v790 = vadd.f32 0.0, %v789
        %v791 = vpop.f32.mrf.mxu0
        %v792 = vadd.f32 0.0, %v791
        %793 = vmatmul.bf16.gmra.mxu0 %v559
        %v794 = vpop.f32.mrf.mxu0
        %v795 = vadd.f32 0.0, %v794
        %v796 = vpop.f32.mrf.mxu0
        %v797 = vadd.f32 0.0, %v796
        %798 = vmatmul.bf16.gmra.mxu0 %v563
        %v799 = vpop.f32.mrf.mxu0
        %v800 = vadd.f32 0.0, %v799
        %v801 = vpop.f32.mrf.mxu0
        %v802 = vadd.f32 0.0, %v801
        %803 = vmatmul.bf16.gmra.mxu0 %v567
        %v804 = vpop.f32.mrf.mxu0
        %v805 = vadd.f32 0.0, %v804
        %v806 = vpop.f32.mrf.mxu0
        %v807 = vadd.f32 0.0, %v806
        %808 = vmatmul.bf16.gmra.mxu0 %v571
        %v809 = vpop.f32.mrf.mxu0
        %v810 = vadd.f32 0.0, %v809
        %v811 = vpop.f32.mrf.mxu0
        %v812 = vadd.f32 0.0, %v811
        %813 = vmatmul.bf16.gmra.mxu0 %v575
        %v814 = vpop.f32.mrf.mxu0
        %v815 = vadd.f32 0.0, %v814
        %v816 = vpop.f32.mrf.mxu0
        %v817 = vadd.f32 0.0, %v816
        %818 = vmatmul.bf16.gmra.mxu0 %v579
        %v819 = vpop.f32.mrf.mxu0
        %v820 = vadd.f32 0.0, %v819
        %v821 = vpop.f32.mrf.mxu0
        %v822 = vadd.f32 0.0, %v821
        %823 = vdwg.mxu0
        %824 = vmatpush.bf16.msra.mxu0 %v726
        %825 = vmatpush.bf16.msra.mxu0 %v725
        %826 = vmatpush.bf16.msra.mxu0 %v724
        %827 = vmatpush.bf16.msra.mxu0 %v723
        %828 = vmatpush.bf16.msra.mxu0 %v722
        %829 = vmatpush.bf16.msra.mxu0 %v721
        %830 = vmatpush.bf16.msra.mxu0 %v720
        %831 = vmatpush.bf16.msra.mxu0 %v719
        %832 = vmatmul.bf16.gmra.mxu0 %v552
        %v833 = vpop.f32.mrf.mxu0
        %v834 = vadd.f32 %v785, %v833
        %v835 = vpop.f32.mrf.mxu0
        %v836 = vadd.f32 %v787, %v835
        %837 = vmatmul.bf16.gmra.mxu0 %v556
        %v838 = vpop.f32.mrf.mxu0
        %v839 = vadd.f32 %v790, %v838
        %v840 = vpop.f32.mrf.mxu0
        %v841 = vadd.f32 %v792, %v840
        %842 = vmatmul.bf16.gmra.mxu0 %v560
        %v843 = vpop.f32.mrf.mxu0
        %v844 = vadd.f32 %v795, %v843
        %v845 = vpop.f32.mrf.mxu0
        %v846 = vadd.f32 %v797, %v845
        %847 = vmatmul.bf16.gmra.mxu0 %v564
        %v848 = vpop.f32.mrf.mxu0
        %v849 = vadd.f32 %v800, %v848
        %v850 = vpop.f32.mrf.mxu0
        %v851 = vadd.f32 %v802, %v850
        %852 = vmatmul.bf16.gmra.mxu0 %v568
        %v853 = vpop.f32.mrf.mxu0
        %v854 = vadd.f32 %v805, %v853
        %v855 = vpop.f32.mrf.mxu0
        %v856 = vadd.f32 %v807, %v855
        %857 = vmatmul.bf16.gmra.mxu0 %v572
        %v858 = vpop.f32.mrf.mxu0
        %v859 = vadd.f32 %v810, %v858
        %v860 = vpop.f32.mrf.mxu0
        %v861 = vadd.f32 %v812, %v860
        %862 = vmatmul.bf16.gmra.mxu0 %v576
        %v863 = vpop.f32.mrf.mxu0
        %v864 = vadd.f32 %v815, %v863
        %v865 = vpop.f32.mrf.mxu0
        %v866 = vadd.f32 %v817, %v865
        %867 = vmatmul.bf16.gmra.mxu0 %v580
        %v868 = vpop.f32.mrf.mxu0
        %v869 = vadd.f32 %v820, %v868
        %v870 = vpop.f32.mrf.mxu0
        %v871 = vadd.f32 %v822, %v870
        %872 = vdwg.mxu0
        %873 = vmatpush.bf16.msra.mxu0 %v734
        %874 = vmatpush.bf16.msra.mxu0 %v733
        %875 = vmatpush.bf16.msra.mxu0 %v732
        %876 = vmatpush.bf16.msra.mxu0 %v731
        %877 = vmatpush.bf16.msra.mxu0 %v730
        %878 = vmatpush.bf16.msra.mxu0 %v729
        %879 = vmatpush.bf16.msra.mxu0 %v728
        %880 = vmatpush.bf16.msra.mxu0 %v727
        %881 = vmatmul.bf16.gmra.mxu0 %v553
        %v882 = vpop.f32.mrf.mxu0
        %v883 = vadd.f32 %v834, %v882
        %v884 = vpop.f32.mrf.mxu0
        %v885 = vadd.f32 %v836, %v884
        %886 = vmatmul.bf16.gmra.mxu0 %v557
        %v887 = vpop.f32.mrf.mxu0
        %v888 = vadd.f32 %v839, %v887
        %v889 = vpop.f32.mrf.mxu0
        %v890 = vadd.f32 %v841, %v889
        %891 = vmatmul.bf16.gmra.mxu0 %v561
        %v892 = vpop.f32.mrf.mxu0
        %v893 = vadd.f32 %v844, %v892
        %v894 = vpop.f32.mrf.mxu0
        %v895 = vadd.f32 %v846, %v894
        %896 = vmatmul.bf16.gmra.mxu0 %v565
        %v897 = vpop.f32.mrf.mxu0
        %v898 = vadd.f32 %v849, %v897
        %v899 = vpop.f32.mrf.mxu0
        %v900 = vadd.f32 %v851, %v899
        %901 = vmatmul.bf16.gmra.mxu0 %v569
        %v902 = vpop.f32.mrf.mxu0
        %v903 = vadd.f32 %v854, %v902
        %v904 = vpop.f32.mrf.mxu0
        %v905 = vadd.f32 %v856, %v904
        %906 = vmatmul.bf16.gmra.mxu0 %v573
        %v907 = vpop.f32.mrf.mxu0
        %v908 = vadd.f32 %v859, %v907
        %v909 = vpop.f32.mrf.mxu0
        %v910 = vadd.f32 %v861, %v909
        %911 = vmatmul.bf16.gmra.mxu0 %v577
        %v912 = vpop.f32.mrf.mxu0
        %v913 = vadd.f32 %v864, %v912
        %v914 = vpop.f32.mrf.mxu0
        %v915 = vadd.f32 %v866, %v914
        %916 = vmatmul.bf16.gmra.mxu0 %v581
        %v917 = vpop.f32.mrf.mxu0
        %v918 = vadd.f32 %v869, %v917
        %v919 = vpop.f32.mrf.mxu0
        %v920 = vadd.f32 %v871, %v919
        %921 = vdwg.mxu0
        %922 = vmatpush.bf16.msra.mxu0 %v742
        %923 = vmatpush.bf16.msra.mxu0 %v741
        %924 = vmatpush.bf16.msra.mxu0 %v740
        %925 = vmatpush.bf16.msra.mxu0 %v739
        %926 = vmatpush.bf16.msra.mxu0 %v738
        %927 = vmatpush.bf16.msra.mxu0 %v737
        %928 = vmatpush.bf16.msra.mxu0 %v736
        %929 = vmatpush.bf16.msra.mxu0 %v735
        %930 = vmatmul.bf16.gmra.mxu0 %v554
        %v931 = vpop.f32.mrf.mxu0
        %v932 = vadd.f32 %v883, %v931
        %v933 = vpop.f32.mrf.mxu0
        %v934 = vadd.f32 %v885, %v933
        %935 = vmatmul.bf16.gmra.mxu0 %v558
        %v936 = vpop.f32.mrf.mxu0
        %v937 = vadd.f32 %v888, %v936
        %v938 = vpop.f32.mrf.mxu0
        %v939 = vadd.f32 %v890, %v938
        %940 = vmatmul.bf16.gmra.mxu0 %v562
        %v941 = vpop.f32.mrf.mxu0
        %v942 = vadd.f32 %v893, %v941
        %v943 = vpop.f32.mrf.mxu0
        %v944 = vadd.f32 %v895, %v943
        %945 = vmatmul.bf16.gmra.mxu0 %v566
        %v946 = vpop.f32.mrf.mxu0
        %v947 = vadd.f32 %v898, %v946
        %v948 = vpop.f32.mrf.mxu0
        %v949 = vadd.f32 %v900, %v948
        %950 = vmatmul.bf16.gmra.mxu0 %v570
        %v951 = vpop.f32.mrf.mxu0
        %v952 = vadd.f32 %v903, %v951
        %v953 = vpop.f32.mrf.mxu0
        %v954 = vadd.f32 %v905, %v953
        %955 = vmatmul.bf16.gmra.mxu0 %v574
        %v956 = vpop.f32.mrf.mxu0
        %v957 = vadd.f32 %v908, %v956
        %v958 = vpop.f32.mrf.mxu0
        %v959 = vadd.f32 %v910, %v958
        %960 = vmatmul.bf16.gmra.mxu0 %v578
        %v961 = vpop.f32.mrf.mxu0
        %v962 = vadd.f32 %v913, %v961
        %v963 = vpop.f32.mrf.mxu0
        %v964 = vadd.f32 %v915, %v963
        %965 = vmatmul.bf16.gmra.mxu0 %v582
        %v966 = vpop.f32.mrf.mxu0
        %v967 = vadd.f32 %v918, %v966
        %v968 = vpop.f32.mrf.mxu0
        %v969 = vadd.f32 %v920, %v968
        %970 = vdwg.mxu0
        %v1003 = vunpack.c.l.b16 %v391
        %v1004 = vunpack.c.h.b16 %v391
        %v1005 = vunpack.c.l.b16 %v392
        %v1006 = vunpack.c.h.b16 %v392
        %v1007 = vunpack.c.l.b16 %v393
        %v1008 = vunpack.c.h.b16 %v393
        %v1009 = vunpack.c.l.b16 %v394
        %v1010 = vunpack.c.h.b16 %v394
        %v1011 = vunpack.c.l.b16 %v395
        %v1012 = vunpack.c.h.b16 %v395
        %v1013 = vunpack.c.l.b16 %v396
        %v1014 = vunpack.c.h.b16 %v396
        %v1015 = vunpack.c.l.b16 %v397
        %v1016 = vunpack.c.h.b16 %v397
        %v1017 = vunpack.c.l.b16 %v398
        %v1018 = vunpack.c.h.b16 %v398
        %v1019 = vunpack.c.l.b16 %v399
        %v1020 = vunpack.c.h.b16 %v399
        %v1021 = vunpack.c.l.b16 %v400
        %v1022 = vunpack.c.h.b16 %v400
        %v1023 = vunpack.c.l.b16 %v401
        %v1024 = vunpack.c.h.b16 %v401
        %v1025 = vunpack.c.l.b16 %v402
        %v1026 = vunpack.c.h.b16 %v402
        %v1027 = vunpack.c.l.b16 %v403
        %v1028 = vunpack.c.h.b16 %v403
        %v1029 = vunpack.c.l.b16 %v404
        %v1030 = vunpack.c.h.b16 %v404
        %v1031 = vunpack.c.l.b16 %v405
        %v1032 = vunpack.c.h.b16 %v405
        %v1033 = vunpack.c.l.b16 %v406
        %v1034 = vunpack.c.h.b16 %v406
        %v1035 = vunpack.c.l.b16 %v407
        %v1036 = vunpack.c.h.b16 %v407
        %v1037 = vunpack.c.l.b16 %v408
        %v1038 = vunpack.c.h.b16 %v408
        %v1039 = vunpack.c.l.b16 %v409
        %v1040 = vunpack.c.h.b16 %v409
        %v1041 = vunpack.c.l.b16 %v410
        %v1042 = vunpack.c.h.b16 %v410
        %v1043 = vunpack.c.l.b16 %v411
        %v1044 = vunpack.c.h.b16 %v411
        %v1045 = vunpack.c.l.b16 %v412
        %v1046 = vunpack.c.h.b16 %v412
        %v1047 = vunpack.c.l.b16 %v413
        %v1048 = vunpack.c.h.b16 %v413
        %v1049 = vunpack.c.l.b16 %v414
        %v1050 = vunpack.c.h.b16 %v414
        %v1051 = vunpack.c.l.b16 %v415
        %v1052 = vunpack.c.h.b16 %v415
        %v1053 = vunpack.c.l.b16 %v416
        %v1054 = vunpack.c.h.b16 %v416
        %v1055 = vunpack.c.l.b16 %v417
        %v1056 = vunpack.c.h.b16 %v417
        %v1057 = vunpack.c.l.b16 %v418
        %v1058 = vunpack.c.h.b16 %v418
        %v1059 = vunpack.c.l.b16 %v419
        %v1060 = vunpack.c.h.b16 %v419
        %v1061 = vunpack.c.l.b16 %v420
        %v1062 = vunpack.c.h.b16 %v420
        %v1063 = vunpack.c.l.b16 %v421
        %v1064 = vunpack.c.h.b16 %v421
        %v1065 = vunpack.c.l.b16 %v422
        %v1066 = vunpack.c.h.b16 %v422
        %v1067 = vpack.c.b16 %v1007, %v1003
        %v1068 = vpack.c.b16 %v1008, %v1004
        %v1069 = vpack.c.b16 %v1009, %v1005
        %v1070 = vpack.c.b16 %v1010, %v1006
        %v1071 = vpack.c.b16 %v1015, %v1011
        %v1072 = vpack.c.b16 %v1016, %v1012
        %v1073 = vpack.c.b16 %v1017, %v1013
        %v1074 = vpack.c.b16 %v1018, %v1014
        %v1075 = vpack.c.b16 %v1023, %v1019
        %v1076 = vpack.c.b16 %v1024, %v1020
        %v1077 = vpack.c.b16 %v1025, %v1021
        %v1078 = vpack.c.b16 %v1026, %v1022
        %v1079 = vpack.c.b16 %v1031, %v1027
        %v1080 = vpack.c.b16 %v1032, %v1028
        %v1081 = vpack.c.b16 %v1033, %v1029
        %v1082 = vpack.c.b16 %v1034, %v1030
        %v1083 = vpack.c.b16 %v1039, %v1035
        %v1084 = vpack.c.b16 %v1040, %v1036
        %v1085 = vpack.c.b16 %v1041, %v1037
        %v1086 = vpack.c.b16 %v1042, %v1038
        %v1087 = vpack.c.b16 %v1047, %v1043
        %v1088 = vpack.c.b16 %v1048, %v1044
        %v1089 = vpack.c.b16 %v1049, %v1045
        %v1090 = vpack.c.b16 %v1050, %v1046
        %v1091 = vpack.c.b16 %v1055, %v1051
        %v1092 = vpack.c.b16 %v1056, %v1052
        %v1093 = vpack.c.b16 %v1057, %v1053
        %v1094 = vpack.c.b16 %v1058, %v1054
        %v1095 = vpack.c.b16 %v1063, %v1059
        %v1096 = vpack.c.b16 %v1064, %v1060
        %v1097 = vpack.c.b16 %v1065, %v1061
        %v1098 = vpack.c.b16 %v1066, %v1062
        %1131 = vmatpush.bf16.msra.mxu0 %v718
        %1132 = vmatpush.bf16.msra.mxu0 %v717
        %1133 = vmatpush.bf16.msra.mxu0 %v716
        %1134 = vmatpush.bf16.msra.mxu0 %v715
        %1135 = vmatpush.bf16.msra.mxu0 %v714
        %1136 = vmatpush.bf16.msra.mxu0 %v713
        %1137 = vmatpush.bf16.msra.mxu0 %v712
        %1138 = vmatpush.bf16.msra.mxu0 %v711
        %1139 = vmatmul.bf16.gmra.mxu0 %v1067
        %v1140 = vpop.f32.mrf.mxu0
        %v1141 = vadd.f32 %v932, %v1140
        %v1142 = vpop.f32.mrf.mxu0
        %v1143 = vadd.f32 %v934, %v1142
        %1144 = vmatmul.bf16.gmra.mxu0 %v1071
        %v1145 = vpop.f32.mrf.mxu0
        %v1146 = vadd.f32 %v937, %v1145
        %v1147 = vpop.f32.mrf.mxu0
        %v1148 = vadd.f32 %v939, %v1147
        %1149 = vmatmul.bf16.gmra.mxu0 %v1075
        %v1150 = vpop.f32.mrf.mxu0
        %v1151 = vadd.f32 %v942, %v1150
        %v1152 = vpop.f32.mrf.mxu0
        %v1153 = vadd.f32 %v944, %v1152
        %1154 = vmatmul.bf16.gmra.mxu0 %v1079
        %v1155 = vpop.f32.mrf.mxu0
        %v1156 = vadd.f32 %v947, %v1155
        %v1157 = vpop.f32.mrf.mxu0
        %v1158 = vadd.f32 %v949, %v1157
        %1159 = vmatmul.bf16.gmra.mxu0 %v1083
        %v1160 = vpop.f32.mrf.mxu0
        %v1161 = vadd.f32 %v952, %v1160
        %v1162 = vpop.f32.mrf.mxu0
        %v1163 = vadd.f32 %v954, %v1162
        %1164 = vmatmul.bf16.gmra.mxu0 %v1087
        %v1165 = vpop.f32.mrf.mxu0
        %v1166 = vadd.f32 %v957, %v1165
        %v1167 = vpop.f32.mrf.mxu0
        %v1168 = vadd.f32 %v959, %v1167
        %1169 = vmatmul.bf16.gmra.mxu0 %v1091
        %v1170 = vpop.f32.mrf.mxu0
        %v1171 = vadd.f32 %v962, %v1170
        %v1172 = vpop.f32.mrf.mxu0
        %v1173 = vadd.f32 %v964, %v1172
        %1174 = vmatmul.bf16.gmra.mxu0 %v1095
        %v1175 = vpop.f32.mrf.mxu0
        %v1176 = vadd.f32 %v967, %v1175
        %v1177 = vpop.f32.mrf.mxu0
        %v1178 = vadd.f32 %v969, %v1177
        %1179 = vdwg.mxu0
        %1180 = vmatpush.bf16.msra.mxu0 %v726
        %1181 = vmatpush.bf16.msra.mxu0 %v725
        %1182 = vmatpush.bf16.msra.mxu0 %v724
        %1183 = vmatpush.bf16.msra.mxu0 %v723
        %1184 = vmatpush.bf16.msra.mxu0 %v722
        %1185 = vmatpush.bf16.msra.mxu0 %v721
        %1186 = vmatpush.bf16.msra.mxu0 %v720
        %1187 = vmatpush.bf16.msra.mxu0 %v719
        %1188 = vmatmul.bf16.gmra.mxu0 %v1068
        %v1189 = vpop.f32.mrf.mxu0
        %v1190 = vadd.f32 %v1141, %v1189
        %v1191 = vpop.f32.mrf.mxu0
        %v1192 = vadd.f32 %v1143, %v1191
        %1193 = vmatmul.bf16.gmra.mxu0 %v1072
        %v1194 = vpop.f32.mrf.mxu0
        %v1195 = vadd.f32 %v1146, %v1194
        %v1196 = vpop.f32.mrf.mxu0
        %v1197 = vadd.f32 %v1148, %v1196
        %1198 = vmatmul.bf16.gmra.mxu0 %v1076
        %v1199 = vpop.f32.mrf.mxu0
        %v1200 = vadd.f32 %v1151, %v1199
        %v1201 = vpop.f32.mrf.mxu0
        %v1202 = vadd.f32 %v1153, %v1201
        %1203 = vmatmul.bf16.gmra.mxu0 %v1080
        %v1204 = vpop.f32.mrf.mxu0
        %v1205 = vadd.f32 %v1156, %v1204
        %v1206 = vpop.f32.mrf.mxu0
        %v1207 = vadd.f32 %v1158, %v1206
        %1208 = vmatmul.bf16.gmra.mxu0 %v1084
        %v1209 = vpop.f32.mrf.mxu0
        %v1210 = vadd.f32 %v1161, %v1209
        %v1211 = vpop.f32.mrf.mxu0
        %v1212 = vadd.f32 %v1163, %v1211
        %1213 = vmatmul.bf16.gmra.mxu0 %v1088
        %v1214 = vpop.f32.mrf.mxu0
        %v1215 = vadd.f32 %v1166, %v1214
        %v1216 = vpop.f32.mrf.mxu0
        %v1217 = vadd.f32 %v1168, %v1216
        %1218 = vmatmul.bf16.gmra.mxu0 %v1092
        %v1219 = vpop.f32.mrf.mxu0
        %v1220 = vadd.f32 %v1171, %v1219
        %v1221 = vpop.f32.mrf.mxu0
        %v1222 = vadd.f32 %v1173, %v1221
        %1223 = vmatmul.bf16.gmra.mxu0 %v1096
        %v1224 = vpop.f32.mrf.mxu0
        %v1225 = vadd.f32 %v1176, %v1224
        %v1226 = vpop.f32.mrf.mxu0
        %v1227 = vadd.f32 %v1178, %v1226
        %1228 = vdwg.mxu0
        %1229 = vmatpush.bf16.msra.mxu0 %v734
        %1230 = vmatpush.bf16.msra.mxu0 %v733
        %1231 = vmatpush.bf16.msra.mxu0 %v732
        %1232 = vmatpush.bf16.msra.mxu0 %v731
        %1233 = vmatpush.bf16.msra.mxu0 %v730
        %1234 = vmatpush.bf16.msra.mxu0 %v729
        %1235 = vmatpush.bf16.msra.mxu0 %v728
        %1236 = vmatpush.bf16.msra.mxu0 %v727
        %1237 = vmatmul.bf16.gmra.mxu0 %v1069
        %v1238 = vpop.f32.mrf.mxu0
        %v1239 = vadd.f32 %v1190, %v1238
        %v1240 = vpop.f32.mrf.mxu0
        %v1241 = vadd.f32 %v1192, %v1240
        %1242 = vmatmul.bf16.gmra.mxu0 %v1073
        %v1243 = vpop.f32.mrf.mxu0
        %v1244 = vadd.f32 %v1195, %v1243
        %v1245 = vpop.f32.mrf.mxu0
        %v1246 = vadd.f32 %v1197, %v1245
        %1247 = vmatmul.bf16.gmra.mxu0 %v1077
        %v1248 = vpop.f32.mrf.mxu0
        %v1249 = vadd.f32 %v1200, %v1248
        %v1250 = vpop.f32.mrf.mxu0
        %v1251 = vadd.f32 %v1202, %v1250
        %1252 = vmatmul.bf16.gmra.mxu0 %v1081
        %v1253 = vpop.f32.mrf.mxu0
        %v1254 = vadd.f32 %v1205, %v1253
        %v1255 = vpop.f32.mrf.mxu0
        %v1256 = vadd.f32 %v1207, %v1255
        %1257 = vmatmul.bf16.gmra.mxu0 %v1085
        %v1258 = vpop.f32.mrf.mxu0
        %v1259 = vadd.f32 %v1210, %v1258
        %v1260 = vpop.f32.mrf.mxu0
        %v1261 = vadd.f32 %v1212, %v1260
        %1262 = vmatmul.bf16.gmra.mxu0 %v1089
        %v1263 = vpop.f32.mrf.mxu0
        %v1264 = vadd.f32 %v1215, %v1263
        %v1265 = vpop.f32.mrf.mxu0
        %v1266 = vadd.f32 %v1217, %v1265
        %1267 = vmatmul.bf16.gmra.mxu0 %v1093
        %v1268 = vpop.f32.mrf.mxu0
        %v1269 = vadd.f32 %v1220, %v1268
        %v1270 = vpop.f32.mrf.mxu0
        %v1271 = vadd.f32 %v1222, %v1270
        %1272 = vmatmul.bf16.gmra.mxu0 %v1097
        %v1273 = vpop.f32.mrf.mxu0
        %v1274 = vadd.f32 %v1225, %v1273
        %v1275 = vpop.f32.mrf.mxu0
        %v1276 = vadd.f32 %v1227, %v1275
        %1277 = vdwg.mxu0
        %1278 = vmatpush.bf16.msra.mxu0 %v742
        %1279 = vmatpush.bf16.msra.mxu0 %v741
        %1280 = vmatpush.bf16.msra.mxu0 %v740
        %1281 = vmatpush.bf16.msra.mxu0 %v739
        %1282 = vmatpush.bf16.msra.mxu0 %v738
        %1283 = vmatpush.bf16.msra.mxu0 %v737
        %1284 = vmatpush.bf16.msra.mxu0 %v736
        %1285 = vmatpush.bf16.msra.mxu0 %v735
        %1286 = vmatmul.bf16.gmra.mxu0 %v1070
        %v1287 = vpop.f32.mrf.mxu0
        %v1288 = vadd.f32 %v1239, %v1287
        %v1289 = vpop.f32.mrf.mxu0
        %v1290 = vadd.f32 %v1241, %v1289
        %1291 = vmatmul.bf16.gmra.mxu0 %v1074
        %v1292 = vpop.f32.mrf.mxu0
        %v1293 = vadd.f32 %v1244, %v1292
        %v1294 = vpop.f32.mrf.mxu0
        %v1295 = vadd.f32 %v1246, %v1294
        %1296 = vmatmul.bf16.gmra.mxu0 %v1078
        %v1297 = vpop.f32.mrf.mxu0
        %v1298 = vadd.f32 %v1249, %v1297
        %v1299 = vpop.f32.mrf.mxu0
        %v1300 = vadd.f32 %v1251, %v1299
        %1301 = vmatmul.bf16.gmra.mxu0 %v1082
        %v1302 = vpop.f32.mrf.mxu0
        %v1303 = vadd.f32 %v1254, %v1302
        %v1304 = vpop.f32.mrf.mxu0
        %v1305 = vadd.f32 %v1256, %v1304
        %1306 = vmatmul.bf16.gmra.mxu0 %v1086
        %v1307 = vpop.f32.mrf.mxu0
        %v1308 = vadd.f32 %v1259, %v1307
        %v1309 = vpop.f32.mrf.mxu0
        %v1310 = vadd.f32 %v1261, %v1309
        %1311 = vmatmul.bf16.gmra.mxu0 %v1090
        %v1312 = vpop.f32.mrf.mxu0
        %v1313 = vadd.f32 %v1264, %v1312
        %v1314 = vpop.f32.mrf.mxu0
        %v1315 = vadd.f32 %v1266, %v1314
        %1316 = vmatmul.bf16.gmra.mxu0 %v1094
        %v1317 = vpop.f32.mrf.mxu0
        %v1318 = vadd.f32 %v1269, %v1317
        %v1319 = vpop.f32.mrf.mxu0
        %v1320 = vadd.f32 %v1271, %v1319
        %1321 = vmatmul.bf16.gmra.mxu0 %v1098
        %v1322 = vpop.f32.mrf.mxu0
        %v1323 = vadd.f32 %v1274, %v1322
        %v1324 = vpop.f32.mrf.mxu0
        %v1325 = vadd.f32 %v1276, %v1324
        %1326 = vdwg.mxu0
        %v1327 = vmul.f32 %v263, %v263
        %v1328 = vmul.f32 %v264, %v264
        %v1329 = vmul.f32 %v265, %v265
        %v1330 = vmul.f32 %v266, %v266
        %v1331 = vmul.f32 %v267, %v267
        %v1332 = vmul.f32 %v268, %v268
        %v1333 = vmul.f32 %v269, %v269
        %v1334 = vmul.f32 %v270, %v270
        %v1335 = vmul.f32 %v271, %v271
        %v1336 = vmul.f32 %v272, %v272
        %v1337 = vmul.f32 %v273, %v273
        %v1338 = vmul.f32 %v274, %v274
        %v1339 = vmul.f32 %v275, %v275
        %v1340 = vmul.f32 %v276, %v276
        %v1341 = vmul.f32 %v277, %v277
        %v1342 = vmul.f32 %v278, %v278
        %v1343 = vmul.f32 %v279, %v279
        %v1344 = vmul.f32 %v280, %v280
        %v1345 = vmul.f32 %v281, %v281
        %v1346 = vmul.f32 %v282, %v282
        %v1347 = vmul.f32 %v283, %v283
        %v1348 = vmul.f32 %v284, %v284
        %v1349 = vmul.f32 %v285, %v285
        %v1350 = vmul.f32 %v286, %v286
        %v1351 = vmul.f32 %v287, %v287
        %v1352 = vmul.f32 %v288, %v288
        %v1353 = vmul.f32 %v289, %v289
        %v1354 = vmul.f32 %v290, %v290
        %v1355 = vmul.f32 %v291, %v291
        %v1356 = vmul.f32 %v292, %v292
        %v1357 = vmul.f32 %v293, %v293
        %v1358 = vmul.f32 %v294, %v294
        %v1359 = vmul.f32 %v295, %v295
        %v1360 = vmul.f32 %v296, %v296
        %v1361 = vmul.f32 %v297, %v297
        %v1362 = vmul.f32 %v298, %v298
        %v1363 = vmul.f32 %v299, %v299
        %v1364 = vmul.f32 %v300, %v300
        %v1365 = vmul.f32 %v301, %v301
        %v1366 = vmul.f32 %v302, %v302
        %v1367 = vmul.f32 %v303, %v303
        %v1368 = vmul.f32 %v304, %v304
        %v1369 = vmul.f32 %v305, %v305
        %v1370 = vmul.f32 %v306, %v306
        %v1371 = vmul.f32 %v307, %v307
        %v1372 = vmul.f32 %v308, %v308
        %v1373 = vmul.f32 %v309, %v309
        %v1374 = vmul.f32 %v310, %v310
        %v1375 = vmul.f32 %v311, %v311
        %v1376 = vmul.f32 %v312, %v312
        %v1377 = vmul.f32 %v313, %v313
        %v1378 = vmul.f32 %v314, %v314
        %v1379 = vmul.f32 %v315, %v315
        %v1380 = vmul.f32 %v316, %v316
        %v1381 = vmul.f32 %v317, %v317
        %v1382 = vmul.f32 %v318, %v318
        %v1383 = vmul.f32 %v319, %v319
        %v1384 = vmul.f32 %v320, %v320
        %v1385 = vmul.f32 %v321, %v321
        %v1386 = vmul.f32 %v322, %v322
        %v1387 = vmul.f32 %v323, %v323
        %v1388 = vmul.f32 %v324, %v324
        %v1389 = vmul.f32 %v325, %v325
        %v1390 = vmul.f32 %v326, %v326
        %v1391 = vadd.f32 %v1327, %v1328
        %v1392 = vadd.f32 %v1391, %v1329
        %v1393 = vadd.f32 %v1392, %v1330
        %1394 = vadd.xlane.f32.xlu0 %v1393
        %v1395 = vpop.xlane.xlu0 %1394
        %v1396 = vadd.f32 %v1331, %v1332
        %v1397 = vadd.f32 %v1396, %v1333
        %v1398 = vadd.f32 %v1397, %v1334
        %1399 = vadd.xlane.f32.xlu0 %v1398
        %v1400 = vpop.xlane.xlu0 %1399
        %v1401 = vadd.f32 %v1335, %v1336
        %v1402 = vadd.f32 %v1401, %v1337
        %v1403 = vadd.f32 %v1402, %v1338
        %1404 = vadd.xlane.f32.xlu0 %v1403
        %v1405 = vpop.xlane.xlu0 %1404
        %v1406 = vadd.f32 %v1339, %v1340
        %v1407 = vadd.f32 %v1406, %v1341
        %v1408 = vadd.f32 %v1407, %v1342
        %1409 = vadd.xlane.f32.xlu0 %v1408
        %v1410 = vpop.xlane.xlu0 %1409
        %v1411 = vadd.f32 %v1343, %v1344
        %v1412 = vadd.f32 %v1411, %v1345
        %v1413 = vadd.f32 %v1412, %v1346
        %1414 = vadd.xlane.f32.xlu0 %v1413
        %v1415 = vpop.xlane.xlu0 %1414
        %v1416 = vadd.f32 %v1347, %v1348
        %v1417 = vadd.f32 %v1416, %v1349
        %v1418 = vadd.f32 %v1417, %v1350
        %1419 = vadd.xlane.f32.xlu0 %v1418
        %v1420 = vpop.xlane.xlu0 %1419
        %v1421 = vadd.f32 %v1351, %v1352
        %v1422 = vadd.f32 %v1421, %v1353
        %v1423 = vadd.f32 %v1422, %v1354
        %1424 = vadd.xlane.f32.xlu0 %v1423
        %v1425 = vpop.xlane.xlu0 %1424
        %v1426 = vadd.f32 %v1355, %v1356
        %v1427 = vadd.f32 %v1426, %v1357
        %v1428 = vadd.f32 %v1427, %v1358
        %1429 = vadd.xlane.f32.xlu0 %v1428
        %v1430 = vpop.xlane.xlu0 %1429
        %v1431 = vadd.f32 %v1359, %v1360
        %v1432 = vadd.f32 %v1431, %v1361
        %v1433 = vadd.f32 %v1432, %v1362
        %1434 = vadd.xlane.f32.xlu0 %v1433
        %v1435 = vpop.xlane.xlu0 %1434
        %v1436 = vadd.f32 %v1363, %v1364
        %v1437 = vadd.f32 %v1436, %v1365
        %v1438 = vadd.f32 %v1437, %v1366
        %1439 = vadd.xlane.f32.xlu0 %v1438
        %v1440 = vpop.xlane.xlu0 %1439
        %v1441 = vadd.f32 %v1367, %v1368
        %v1442 = vadd.f32 %v1441, %v1369
        %v1443 = vadd.f32 %v1442, %v1370
        %1444 = vadd.xlane.f32.xlu0 %v1443
        %v1445 = vpop.xlane.xlu0 %1444
        %v1446 = vadd.f32 %v1371, %v1372
        %v1447 = vadd.f32 %v1446, %v1373
        %v1448 = vadd.f32 %v1447, %v1374
        %1449 = vadd.xlane.f32.xlu0 %v1448
        %v1450 = vpop.xlane.xlu0 %1449
        %v1451 = vadd.f32 %v1375, %v1376
        %v1452 = vadd.f32 %v1451, %v1377
        %v1453 = vadd.f32 %v1452, %v1378
        %1454 = vadd.xlane.f32.xlu0 %v1453
        %v1455 = vpop.xlane.xlu0 %1454
        %v1456 = vadd.f32 %v1379, %v1380
        %v1457 = vadd.f32 %v1456, %v1381
        %v1458 = vadd.f32 %v1457, %v1382
        %1459 = vadd.xlane.f32.xlu0 %v1458
        %v1460 = vpop.xlane.xlu0 %1459
        %v1461 = vadd.f32 %v1383, %v1384
        %v1462 = vadd.f32 %v1461, %v1385
        %v1463 = vadd.f32 %v1462, %v1386
        %1464 = vadd.xlane.f32.xlu0 %v1463
        %v1465 = vpop.xlane.xlu0 %1464
        %v1466 = vadd.f32 %v1387, %v1388
        %v1467 = vadd.f32 %v1466, %v1389
        %v1468 = vadd.f32 %v1467, %v1390
        %1469 = vadd.xlane.f32.xlu0 %v1468
        %v1470 = vpop.xlane.xlu0 %1469
        %v1471 = vmul.f32 %v1288, %v1288
        %v1472 = vmul.f32 %v1290, %v1290
        %v1473 = vmul.f32 %v1293, %v1293
        %v1474 = vmul.f32 %v1295, %v1295
        %v1475 = vmul.f32 %v1298, %v1298
        %v1476 = vmul.f32 %v1300, %v1300
        %v1477 = vmul.f32 %v1303, %v1303
        %v1478 = vmul.f32 %v1305, %v1305
        %v1479 = vmul.f32 %v1308, %v1308
        %v1480 = vmul.f32 %v1310, %v1310
        %v1481 = vmul.f32 %v1313, %v1313
        %v1482 = vmul.f32 %v1315, %v1315
        %v1483 = vmul.f32 %v1318, %v1318
        %v1484 = vmul.f32 %v1320, %v1320
        %v1485 = vmul.f32 %v1323, %v1323
        %v1486 = vmul.f32 %v1325, %v1325
        %vm1487 = vcmask 261120
        %v1488 = vsel %vm1487, %v1471, 0.0
        %1489 = vadd.xlane.f32.xlu0 %v1488
        %v1490 = vpop.xlane.xlu0 %1489
        %v1491 = vsel %vm1487, %v1472, 0.0
        %1492 = vadd.xlane.f32.xlu0 %v1491
        %v1493 = vpop.xlane.xlu0 %1492
        %v1494 = vsel %vm1487, %v1473, 0.0
        %1495 = vadd.xlane.f32.xlu0 %v1494
        %v1496 = vpop.xlane.xlu0 %1495
        %v1497 = vsel %vm1487, %v1474, 0.0
        %1498 = vadd.xlane.f32.xlu0 %v1497
        %v1499 = vpop.xlane.xlu0 %1498
        %v1500 = vsel %vm1487, %v1475, 0.0
        %1501 = vadd.xlane.f32.xlu0 %v1500
        %v1502 = vpop.xlane.xlu0 %1501
        %v1503 = vsel %vm1487, %v1476, 0.0
        %1504 = vadd.xlane.f32.xlu0 %v1503
        %v1505 = vpop.xlane.xlu0 %1504
        %v1506 = vsel %vm1487, %v1477, 0.0
        %1507 = vadd.xlane.f32.xlu0 %v1506
        %v1508 = vpop.xlane.xlu0 %1507
        %v1509 = vsel %vm1487, %v1478, 0.0
        %1510 = vadd.xlane.f32.xlu0 %v1509
        %v1511 = vpop.xlane.xlu0 %1510
        %v1512 = vsel %vm1487, %v1479, 0.0
        %1513 = vadd.xlane.f32.xlu0 %v1512
        %v1514 = vpop.xlane.xlu0 %1513
        %v1515 = vsel %vm1487, %v1480, 0.0
        %1516 = vadd.xlane.f32.xlu0 %v1515
        %v1517 = vpop.xlane.xlu0 %1516
        %v1518 = vsel %vm1487, %v1481, 0.0
        %1519 = vadd.xlane.f32.xlu0 %v1518
        %v1520 = vpop.xlane.xlu0 %1519
        %v1521 = vsel %vm1487, %v1482, 0.0
        %1522 = vadd.xlane.f32.xlu0 %v1521
        %v1523 = vpop.xlane.xlu0 %1522
        %v1524 = vsel %vm1487, %v1483, 0.0
        %1525 = vadd.xlane.f32.xlu0 %v1524
        %v1526 = vpop.xlane.xlu0 %1525
        %v1527 = vsel %vm1487, %v1484, 0.0
        %1528 = vadd.xlane.f32.xlu0 %v1527
        %v1529 = vpop.xlane.xlu0 %1528
        %v1530 = vsel %vm1487, %v1485, 0.0
        %1531 = vadd.xlane.f32.xlu0 %v1530
        %v1532 = vpop.xlane.xlu0 %1531
        %v1533 = vsel %vm1487, %v1486, 0.0
        %1534 = vadd.xlane.f32.xlu0 %v1533
        %v1535 = vpop.xlane.xlu0 %1534
        %v1536 = vsub.f32 %v1490, %v1395
        %v1537 = vsub.f32 %v1493, %v1400
        %v1538 = vsub.f32 %v1496, %v1405
        %v1539 = vsub.f32 %v1499, %v1410
        %v1540 = vsub.f32 %v1502, %v1415
        %v1541 = vsub.f32 %v1505, %v1420
        %v1542 = vsub.f32 %v1508, %v1425
        %v1543 = vsub.f32 %v1511, %v1430
        %v1544 = vsub.f32 %v1514, %v1435
        %v1545 = vsub.f32 %v1517, %v1440
        %v1546 = vsub.f32 %v1520, %v1445
        %v1547 = vsub.f32 %v1523, %v1450
        %v1548 = vsub.f32 %v1526, %v1455
        %v1549 = vsub.f32 %v1529, %v1460
        %v1550 = vsub.f32 %v1532, %v1465
        %v1551 = vsub.f32 %v1535, %v1470
        %vm1552 = vcmask 130048
        %v1553 = vsel %vm1552, %v247, 0.0
        %1554 = vadd.xlane.f32.xlu0 %v1553
        %v1555 = vpop.xlane.xlu0 %1554
        %v1556 = vsel %vm1552, %v248, 0.0
        %1557 = vadd.xlane.f32.xlu0 %v1556
        %v1558 = vpop.xlane.xlu0 %1557
        %v1559 = vsel %vm1552, %v249, 0.0
        %1560 = vadd.xlane.f32.xlu0 %v1559
        %v1561 = vpop.xlane.xlu0 %1560
        %v1562 = vsel %vm1552, %v250, 0.0
        %1563 = vadd.xlane.f32.xlu0 %v1562
        %v1564 = vpop.xlane.xlu0 %1563
        %v1565 = vsel %vm1552, %v251, 0.0
        %1566 = vadd.xlane.f32.xlu0 %v1565
        %v1567 = vpop.xlane.xlu0 %1566
        %v1568 = vsel %vm1552, %v252, 0.0
        %1569 = vadd.xlane.f32.xlu0 %v1568
        %v1570 = vpop.xlane.xlu0 %1569
        %v1571 = vsel %vm1552, %v253, 0.0
        %1572 = vadd.xlane.f32.xlu0 %v1571
        %v1573 = vpop.xlane.xlu0 %1572
        %v1574 = vsel %vm1552, %v254, 0.0
        %1575 = vadd.xlane.f32.xlu0 %v1574
        %v1576 = vpop.xlane.xlu0 %1575
        %v1577 = vsel %vm1552, %v255, 0.0
        %1578 = vadd.xlane.f32.xlu0 %v1577
        %v1579 = vpop.xlane.xlu0 %1578
        %v1580 = vsel %vm1552, %v256, 0.0
        %1581 = vadd.xlane.f32.xlu0 %v1580
        %v1582 = vpop.xlane.xlu0 %1581
        %v1583 = vsel %vm1552, %v257, 0.0
        %1584 = vadd.xlane.f32.xlu0 %v1583
        %v1585 = vpop.xlane.xlu0 %1584
        %v1586 = vsel %vm1552, %v258, 0.0
        %1587 = vadd.xlane.f32.xlu0 %v1586
        %v1588 = vpop.xlane.xlu0 %1587
        %v1589 = vsel %vm1552, %v259, 0.0
        %1590 = vadd.xlane.f32.xlu0 %v1589
        %v1591 = vpop.xlane.xlu0 %1590
        %v1592 = vsel %vm1552, %v260, 0.0
        %1593 = vadd.xlane.f32.xlu0 %v1592
        %v1594 = vpop.xlane.xlu0 %1593
        %v1595 = vsel %vm1552, %v261, 0.0
        %1596 = vadd.xlane.f32.xlu0 %v1595
        %v1597 = vpop.xlane.xlu0 %1596
        %v1598 = vsel %vm1552, %v262, 0.0
        %1599 = vadd.xlane.f32.xlu0 %v1598
        %v1600 = vpop.xlane.xlu0 %1599
        %v1601 = vmul.f32 %v1536, 0.5
        %v1602 = vmul.f32 %v1537, 0.5
        %v1603 = vmul.f32 %v1538, 0.5
        %v1604 = vmul.f32 %v1539, 0.5
        %v1605 = vmul.f32 %v1540, 0.5
        %v1606 = vmul.f32 %v1541, 0.5
        %v1607 = vmul.f32 %v1542, 0.5
        %v1608 = vmul.f32 %v1543, 0.5
        %v1609 = vmul.f32 %v1544, 0.5
        %v1610 = vmul.f32 %v1545, 0.5
        %v1611 = vmul.f32 %v1546, 0.5
        %v1612 = vmul.f32 %v1547, 0.5
        %v1613 = vmul.f32 %v1548, 0.5
        %v1614 = vmul.f32 %v1549, 0.5
        %v1615 = vmul.f32 %v1550, 0.5
        %v1616 = vmul.f32 %v1551, 0.5
        %v1617 = vadd.f32 %v1555, %v1601
        %v1618 = vadd.f32 %v1558, %v1602
        %v1619 = vadd.f32 %v1561, %v1603
        %v1620 = vadd.f32 %v1564, %v1604
        %v1621 = vadd.f32 %v1567, %v1605
        %v1622 = vadd.f32 %v1570, %v1606
        %v1623 = vadd.f32 %v1573, %v1607
        %v1624 = vadd.f32 %v1576, %v1608
        %v1625 = vadd.f32 %v1579, %v1609
        %v1626 = vadd.f32 %v1582, %v1610
        %v1627 = vadd.f32 %v1585, %v1611
        %v1628 = vadd.f32 %v1588, %v1612
        %v1629 = vadd.f32 %v1591, %v1613
        %v1630 = vadd.f32 %v1594, %v1614
        %v1631 = vadd.f32 %v1597, %v1615
        %v1632 = vadd.f32 %v1600, %v1616
        %v1649 = vlaneseq
        %v1650 = vand.u32 %v1649, 127
        %v1651 = vperm.slane %v1617, %v1650
        %v1652 = vadd.s32 %v1650, 4294967288
        %v1653 = vperm.slane %v1618, %v1652
        %vm1654 = vcmask 130112
        %v1655 = vsel %vm1654, %v1653, %v1651
        %v1656 = vadd.s32 %v1650, 4294967280
        %v1657 = vperm.slane %v1619, %v1656
        %vm1658 = vcmask 195712
        %v1659 = vsel %vm1658, %v1657, %v1655
        %v1660 = vadd.s32 %v1650, 4294967272
        %v1661 = vperm.slane %v1620, %v1660
        %vm1662 = vcmask 261312
        %v1663 = vsel %vm1662, %v1661, %v1659
        %v1664 = vadd.s32 %v1650, 4294967264
        %v1665 = vperm.slane %v1621, %v1664
        %vm1666 = vcmask 326912
        %v1667 = vsel %vm1666, %v1665, %v1663
        %v1668 = vadd.s32 %v1650, 4294967256
        %v1669 = vperm.slane %v1622, %v1668
        %vm1670 = vcmask 392512
        %v1671 = vsel %vm1670, %v1669, %v1667
        %v1672 = vadd.s32 %v1650, 4294967248
        %v1673 = vperm.slane %v1623, %v1672
        %vm1674 = vcmask 458112
        %v1675 = vsel %vm1674, %v1673, %v1671
        %v1676 = vadd.s32 %v1650, 4294967240
        %v1677 = vperm.slane %v1624, %v1676
        %vm1678 = vcmask 523712
        %v1679 = vsel %vm1678, %v1677, %v1675
        %v1680 = vadd.s32 %v1650, 4294967232
        %v1681 = vperm.slane %v1625, %v1680
        %vm1682 = vcmask 589312
        %v1683 = vsel %vm1682, %v1681, %v1679
        %v1684 = vadd.s32 %v1650, 4294967224
        %v1685 = vperm.slane %v1626, %v1684
        %vm1686 = vcmask 654912
        %v1687 = vsel %vm1686, %v1685, %v1683
        %v1688 = vadd.s32 %v1650, 4294967216
        %v1689 = vperm.slane %v1627, %v1688
        %vm1690 = vcmask 720512
        %v1691 = vsel %vm1690, %v1689, %v1687
        %v1692 = vadd.s32 %v1650, 4294967208
        %v1693 = vperm.slane %v1628, %v1692
        %vm1694 = vcmask 786112
        %v1695 = vsel %vm1694, %v1693, %v1691
        %v1696 = vadd.s32 %v1650, 4294967200
        %v1697 = vperm.slane %v1629, %v1696
        %vm1698 = vcmask 851712
        %v1699 = vsel %vm1698, %v1697, %v1695
        %v1700 = vadd.s32 %v1650, 4294967192
        %v1701 = vperm.slane %v1630, %v1700
        %vm1702 = vcmask 917312
        %v1703 = vsel %vm1702, %v1701, %v1699
        %v1704 = vadd.s32 %v1650, 4294967184
        %v1705 = vperm.slane %v1631, %v1704
        %vm1706 = vcmask 982912
        %v1707 = vsel %vm1706, %v1705, %v1703
        %v1708 = vadd.s32 %v1650, 4294967176
        %v1709 = vperm.slane %v1632, %v1708
        %vm1710 = vcmask 1048512
        %v1711 = vsel %vm1710, %v1709, %v1707
        %1713 = vst [vmem:[%s226] sm:$0x1] %v1711
        %s1714 = sand.u32 %s101, 1
        %s1715 = scalar_lea.sflag [#allocation4], %s1714
        %s1716 = sand.u32 %s101, 1
        %s1717 = scalar_lea.vmem [#allocation5], %s1716
        // Predicated region
        $region37: #{tpu_custom_call.1} parent=31 // pred_check
          %p1718 = pneg %p111
        $region38: #{tpu_custom_call.1} parent=31 // pred_check_branch
          %1720 = sbr.rel (%p1718) target = $region40
        $region39: #{tpu_custom_call.1} parent=31 // pred_region
          %1722 = vsyncadd %s1715, 0
          %s1723 = scalar_lea.hbm %s3, %s20
          %s1725 = sshll.u32 %s1717, 4
          %s1726 = int_to_ptr.vmem [resolvable:$true] %s1725
          %s1727 = sshll.u32 %s1723, 4
          %s1728 = int_to_ptr.hbm [resolvable:$true] %s1727
          %1730 = dma.vmem_to_hbm [thread:$0]  %s1726, 16, %s1728, %s1715
        $region40: #{tpu_custom_call.1} parent=31 // pred_fallthru
          _
      $region32: #{tpu_custom_call.1} parent=5 // pred_fallthru
        _
      %p1731 = scmp.le.s32.totalorder 2, %s15
      // Predicated region
      $region41: #{tpu_custom_call.1} parent=5 // pred_check
        %p1732 = pneg %p1731
      $region42: #{tpu_custom_call.1} parent=5 // pred_check_branch
        %1734 = sbr.rel (%p1732) target = $region44
      $region43: #{tpu_custom_call.1} parent=5 // pred_region
        %s1735 = ssub.s32 %s15, 2
        // Predicated region
        $region45: #{tpu_custom_call.1} parent=43 // pred_check
          %p1736 = pneg %p117
        $region46: #{tpu_custom_call.1} parent=43 // pred_check_branch
          %1738 = sbr.rel (%p1736) target = $region48
        $region47: #{tpu_custom_call.1} parent=43 // pred_region
          %s1739 = sand.u32 %s102, 1
          %s1740 = scalar_lea.sflag [#allocation4], %s1739
          %s1741 = sand.u32 %s102, 1
          %s1742 = scalar_lea.vmem [#allocation5], %s1741
          %1744 = dma.done %s1740, 16
        $region48: #{tpu_custom_call.1} parent=43 // pred_fallthru
          _
      $region44: #{tpu_custom_call.1} parent=5 // pred_fallthru
        _
    $region6: #{tpu_custom_call.1} parent=1 // loop_footer
      %s19 = sadd.s32 1, %s15
    $region7: #{tpu_custom_call.1} parent=1 // loop_footer_branch
      %14 = sbr.rel target = $region3
    $region8: #{tpu_custom_call.1} parent=1 // loop_exit
      _
    %1745 = vsyncpa [#allocation3], 1
    %s1746 = scalar_lea.sflag [#allocation3], 1
    %1747 = vsyncpa %s1746, 1
    %1748 = vsyncpa [#allocation4], 1
    %s1749 = scalar_lea.sflag [#allocation4], 1
    %1750 = vsyncpa %s1749, 1

</llo_original>
